<compile_context>
chip_gen: v5e
topology: v5e:2x2
jax: 0.10.0
libtpu: 0.0.40
codegen_flags: <defaults>
</compile_context>

<pallas_src>
import jax
import jax.numpy as jnp
from jax.experimental import pallas as pl
from jax.experimental.pallas import tpu as pltpu


def innerprod_kernel(h_ref, haa_ref, hta_ref, hata_ref, hneg_ref,
                     aa_ref, ta_ref, ata_ref, neg_ref):
    # H tile is loaded once and reused for all four row-wise inner products.
    h = h_ref[...]                                             # (TM, D)
    aa_ref[...] = jnp.sum(h * haa_ref[...], axis=1, keepdims=True)   # (TM, 1)
    ta_ref[...] = jnp.sum(h * hta_ref[...], axis=1, keepdims=True)
    ata_ref[...] = jnp.sum(h * hata_ref[...], axis=1, keepdims=True)
    neg_ref[...] = jnp.sum(h * hneg_ref[...], axis=1, keepdims=True)


def _choose_tm(N, D, tm_max=512, vmem_budget_bytes=12 * 1024 * 1024):
    """Largest row-tile TM that (a) keeps 5 double-buffered (TM, D) f32 input
    buffers under `vmem_budget_bytes`, (b) is a multiple of 8, and (c) divides
    N evenly so the grid tiles exactly.  Falls back to a single full block."""
    bytes_per_row = 5 * 2 * D * 4        # 5 inputs, double-buffered, f32
    tm = min(N, tm_max, max(8, vmem_budget_bytes // max(bytes_per_row, 1)))
    tm = max(8, (tm // 8) * 8)
    cand = tm
    while cand >= 8:
        if N % cand == 0:
            return cand
        cand -= 8
    return N                              # e.g. N not a multiple of 8: one block


def discriminator_innerprod(H, Haa, Hta, Hata, Hneg, *, tm_max=512):
    N, D = H.shape
    tm = _choose_tm(N, D, tm_max=tm_max)
    grid = (N // tm,)

    in_spec = pl.BlockSpec((tm, D), lambda i: (i, 0))
    out_spec = pl.BlockSpec((tm, 1), lambda i: (i, 0))
    out_sds = jax.ShapeDtypeStruct((N, 1), H.dtype)

    grid_spec = pltpu.PrefetchScalarGridSpec(
        num_scalar_prefetch=0,
        grid=grid,
        in_specs=[in_spec] * 5,
        out_specs=(out_spec,) * 4,
    )

    cost = pl.CostEstimate(
        flops=2 * 4 * N * D,                        # 4 fused mul+add streams
        transcendentals=0,
        bytes_accessed=(5 * N * D + 4 * N) * 4,     # f32 reads + tiny writes
    )

    return pl.pallas_call(
        innerprod_kernel,
        grid_spec=grid_spec,
        out_shape=(out_sds,) * 4,
        compiler_params=pltpu.CompilerParams(
            dimension_semantics=("parallel",),      # shards rows across v7x's 2 TCs
        ),
        cost_estimate=cost,
    )(H, Haa, Hta, Hata, Hneg)


if __name__ == "__main__":
    # Small problem consistent with the module: N rows, D-dim embeddings.
    N, D = 1024, 128                      # -> TM=512, grid=(2,)
    key = jax.random.PRNGKey(0)
    kH, kaa, kta, kata, kneg = jax.random.split(key, 5)

    H = jax.random.normal(kH, (N, D), jnp.float32)
    Haa = jax.random.normal(kaa, (N, D), jnp.float32)
    Hta = jax.random.normal(kta, (N, D), jnp.float32)
    Hata = jax.random.normal(kata, (N, D), jnp.float32)
    Hneg = jax.random.normal(kneg, (N, D), jnp.float32)

    outs = discriminator_innerprod(H, Haa, Hta, Hata, Hneg)
    outs = jax.block_until_ready(outs)

    # Pure-JAX reference for correctness.
    refs = tuple(jnp.sum(H * X, axis=1, keepdims=True)
                 for X in (Haa, Hta, Hata, Hneg))
    assert len(outs) == 4
    for o, r in zip(outs, refs):
        assert o.shape == (N, 1)
        assert jnp.allclose(o, r, atol=1e-4, rtol=1e-4), "mismatch vs reference"

    print("KERNEL_OK")
</pallas_src>

<mosaic_0001>
module attributes {stable_mosaic.version = 11 : i64} {
  func.func @innerprod_kernel(%arg0: i32, %arg1: memref<512x128xf32, #tpu.memory_space<vmem>>, %arg2: memref<512x128xf32, #tpu.memory_space<vmem>>, %arg3: memref<512x128xf32, #tpu.memory_space<vmem>>, %arg4: memref<512x128xf32, #tpu.memory_space<vmem>>, %arg5: memref<512x128xf32, #tpu.memory_space<vmem>>, %arg6: memref<512x1xf32, #tpu.memory_space<vmem>>, %arg7: memref<512x1xf32, #tpu.memory_space<vmem>>, %arg8: memref<512x1xf32, #tpu.memory_space<vmem>>, %arg9: memref<512x1xf32, #tpu.memory_space<vmem>>) attributes {dimension_semantics = [#tpu.dimension_semantics<parallel>], iteration_bounds = array<i64: 2>, scalar_prefetch = 0 : i64, scratch_operands = 0 : i64, tpu.core_type = #tpu.core_type<tc>, window_params = [{transform_indices = @transform_0, window_bounds = array<i64: 512, 128>}, {transform_indices = @transform_1, window_bounds = array<i64: 512, 128>}, {transform_indices = @transform_2, window_bounds = array<i64: 512, 128>}, {transform_indices = @transform_3, window_bounds = array<i64: 512, 128>}, {transform_indices = @transform_4, window_bounds = array<i64: 512, 128>}, {transform_indices = @transform_5, window_bounds = array<i64: 512, 1>}, {transform_indices = @transform_6, window_bounds = array<i64: 512, 1>}, {transform_indices = @transform_7, window_bounds = array<i64: 512, 1>}, {transform_indices = @transform_8, window_bounds = array<i64: 512, 1>}]} {
    %c0 = arith.constant 0 : index
    %c0_0 = arith.constant 0 : index
    %0 = vector.load %arg1[%c0, %c0_0] : memref<512x128xf32, #tpu.memory_space<vmem>>, vector<512x128xf32>
    %c0_1 = arith.constant 0 : index
    %c0_2 = arith.constant 0 : index
    %1 = vector.load %arg2[%c0_1, %c0_2] : memref<512x128xf32, #tpu.memory_space<vmem>>, vector<512x128xf32>
    %2 = arith.mulf %0, %1 : vector<512x128xf32>
    %cst = arith.constant dense<0.000000e+00> : vector<512xf32>
    %3 = vector.multi_reduction <add>, %2, %cst [1] : vector<512x128xf32> to vector<512xf32>
    %4 = vector.shape_cast %3 : vector<512xf32> to vector<512x1xf32>
    %c0_3 = arith.constant 0 : index
    %c0_4 = arith.constant 0 : index
    %5 = vector.load %arg6[%c0_3, %c0_4] : memref<512x1xf32, #tpu.memory_space<vmem>>, vector<512x1xf32>
    tpu.vector_store %arg6[%c0_3, %c0_4], %4 {strides = array<i32>} : memref<512x1xf32, #tpu.memory_space<vmem>>, vector<512x1xf32>,
    %c0_5 = arith.constant 0 : index
    %c0_6 = arith.constant 0 : index
    %6 = vector.load %arg3[%c0_5, %c0_6] : memref<512x128xf32, #tpu.memory_space<vmem>>, vector<512x128xf32>
    %7 = arith.mulf %0, %6 : vector<512x128xf32>
    %cst_7 = arith.constant dense<0.000000e+00> : vector<512xf32>
    %8 = vector.multi_reduction <add>, %7, %cst_7 [1] : vector<512x128xf32> to vector<512xf32>
    %9 = vector.shape_cast %8 : vector<512xf32> to vector<512x1xf32>
    %c0_8 = arith.constant 0 : index
    %c0_9 = arith.constant 0 : index
    %10 = vector.load %arg7[%c0_8, %c0_9] : memref<512x1xf32, #tpu.memory_space<vmem>>, vector<512x1xf32>
    tpu.vector_store %arg7[%c0_8, %c0_9], %9 {strides = array<i32>} : memref<512x1xf32, #tpu.memory_space<vmem>>, vector<512x1xf32>,
    %c0_10 = arith.constant 0 : index
    %c0_11 = arith.constant 0 : index
    %11 = vector.load %arg4[%c0_10, %c0_11] : memref<512x128xf32, #tpu.memory_space<vmem>>, vector<512x128xf32>
    %12 = arith.mulf %0, %11 : vector<512x128xf32>
    %cst_12 = arith.constant dense<0.000000e+00> : vector<512xf32>
    %13 = vector.multi_reduction <add>, %12, %cst_12 [1] : vector<512x128xf32> to vector<512xf32>
    %14 = vector.shape_cast %13 : vector<512xf32> to vector<512x1xf32>
    %c0_13 = arith.constant 0 : index
    %c0_14 = arith.constant 0 : index
    %15 = vector.load %arg8[%c0_13, %c0_14] : memref<512x1xf32, #tpu.memory_space<vmem>>, vector<512x1xf32>
    tpu.vector_store %arg8[%c0_13, %c0_14], %14 {strides = array<i32>} : memref<512x1xf32, #tpu.memory_space<vmem>>, vector<512x1xf32>,
    %c0_15 = arith.constant 0 : index
    %c0_16 = arith.constant 0 : index
    %16 = vector.load %arg5[%c0_15, %c0_16] : memref<512x128xf32, #tpu.memory_space<vmem>>, vector<512x128xf32>
    %17 = arith.mulf %0, %16 : vector<512x128xf32>
    %cst_17 = arith.constant dense<0.000000e+00> : vector<512xf32>
    %18 = vector.multi_reduction <add>, %17, %cst_17 [1] : vector<512x128xf32> to vector<512xf32>
    %19 = vector.shape_cast %18 : vector<512xf32> to vector<512x1xf32>
    %c0_18 = arith.constant 0 : index
    %c0_19 = arith.constant 0 : index
    %20 = vector.load %arg9[%c0_18, %c0_19] : memref<512x1xf32, #tpu.memory_space<vmem>>, vector<512x1xf32>
    tpu.vector_store %arg9[%c0_18, %c0_19], %19 {strides = array<i32>} : memref<512x1xf32, #tpu.memory_space<vmem>>, vector<512x1xf32>,
    return
  }
  func.func @transform_0(%arg0: i32) -> (i32, i32) {
    %c0_i32 = arith.constant 0 : i32
    %c0_i32_0 = arith.constant 0 : i32
    return %arg0, %c0_i32 : i32, i32
  }
  func.func @transform_1(%arg0: i32) -> (i32, i32) {
    %c0_i32 = arith.constant 0 : i32
    %c0_i32_0 = arith.constant 0 : i32
    return %arg0, %c0_i32 : i32, i32
  }
  func.func @transform_2(%arg0: i32) -> (i32, i32) {
    %c0_i32 = arith.constant 0 : i32
    %c0_i32_0 = arith.constant 0 : i32
    return %arg0, %c0_i32 : i32, i32
  }
  func.func @transform_3(%arg0: i32) -> (i32, i32) {
    %c0_i32 = arith.constant 0 : i32
    %c0_i32_0 = arith.constant 0 : i32
    return %arg0, %c0_i32 : i32, i32
  }
  func.func @transform_4(%arg0: i32) -> (i32, i32) {
    %c0_i32 = arith.constant 0 : i32
    %c0_i32_0 = arith.constant 0 : i32
    return %arg0, %c0_i32 : i32, i32
  }
  func.func @transform_5(%arg0: i32) -> (i32, i32) {
    %c0_i32 = arith.constant 0 : i32
    %c0_i32_0 = arith.constant 0 : i32
    return %arg0, %c0_i32 : i32, i32
  }
  func.func @transform_6(%arg0: i32) -> (i32, i32) {
    %c0_i32 = arith.constant 0 : i32
    %c0_i32_0 = arith.constant 0 : i32
    return %arg0, %c0_i32 : i32, i32
  }
  func.func @transform_7(%arg0: i32) -> (i32, i32) {
    %c0_i32 = arith.constant 0 : i32
    %c0_i32_0 = arith.constant 0 : i32
    return %arg0, %c0_i32 : i32, i32
  }
  func.func @transform_8(%arg0: i32) -> (i32, i32) {
    %c0_i32 = arith.constant 0 : i32
    %c0_i32_0 = arith.constant 0 : i32
    return %arg0, %c0_i32 : i32, i32
  }
}

</mosaic_0001>

<llo_original>
// kernel: tpu_custom_call.1
$region0: #{tpu_custom_call.1}
  #allocation0 [shape = 'u32[]', space=smem, size = 0x4, offset = 0x4, fixed_abs, tag = 'smem constant byte address 0x4 - core index']
  #allocation1 [shape = 'u32[72,128]{1,0:T(1,128)}', space=vmem, size = 0x9000, scoped, tag = 'internal scratch']
  %s0 = inlined_call_operand.hbm [shape: f32[1024,128], index: 0, kind: input, shape index: {}]
  %s1 = inlined_call_operand.hbm [shape: f32[1024,128], index: 1, kind: input, shape index: {}]
  %s2 = inlined_call_operand.hbm [shape: f32[1024,128], index: 2, kind: input, shape index: {}]
  %s3 = inlined_call_operand.hbm [shape: f32[1024,128], index: 3, kind: input, shape index: {}]
  %s4 = inlined_call_operand.hbm [shape: f32[1024,128], index: 4, kind: input, shape index: {}]
  %s5 = inlined_call_operand.vmem [shape: f32[1024,1], index: 5, kind: output, shape index: {0}]
  %s6 = inlined_call_operand.vmem [shape: f32[1024,1], index: 6, kind: output, shape index: {1}]
  %s7 = inlined_call_operand.vmem [shape: f32[1024,1], index: 7, kind: output, shape index: {2}]
  %s8 = inlined_call_operand.vmem [shape: f32[1024,1], index: 8, kind: output, shape index: {3}]
  %9 = xla_tuple %s5, %s6, %s7, %s8
  %s10 = sld [smem:[#allocation0]]
  $region97: #{tpu_custom_call.1} parent=0
    _
  %s12 = ssub.s32 1, %s10
  %s13 = scalar_select 0, %s12, %s10
  $region1: #{tpu_custom_call.1} parent=0
    #allocation2 [shape = 'u8[524288]{0}', space=vmem, size = 0x80000, scoped, tag = 'input window, operand 0']
    #allocation3 [shape = 's32[2]{0}', space=sflag, size = 0x8, scoped, tag = 'scoped memory for tpu_custom_call.1']
    #allocation4 [shape = 'u8[524288]{0}', space=vmem, size = 0x80000, scoped, tag = 'input window, operand 1']
    #allocation5 [shape = 's32[2]{0}', space=sflag, size = 0x8, scoped, tag = 'scoped memory for tpu_custom_call.1']
    #allocation6 [shape = 'u8[524288]{0}', space=vmem, size = 0x80000, scoped, tag = 'input window, operand 2']
    #allocation7 [shape = 'u8[524288]{0}', space=vmem, size = 0x80000, scoped, tag = 'input window, operand 3']
    #allocation8 [shape = 's32[2]{0}', space=sflag, size = 0x8, scoped, tag = 'scoped memory for tpu_custom_call.1']
    #allocation9 [shape = 'u8[524288]{0}', space=vmem, size = 0x80000, scoped, tag = 'input window, operand 4']
    %14 = vsyncpa [#allocation3], 0
    %s15 = scalar_lea.sflag [#allocation3], 1
    %16 = vsyncpa %s15, 0
    %17 = vsyncpa [#allocation5], 0
    %s18 = scalar_lea.sflag [#allocation5], 1
    %19 = vsyncpa %s18, 0
    %20 = vsyncpa [#allocation8], 0
    %s21 = scalar_lea.sflag [#allocation8], 1
    %22 = vsyncpa %s21, 0
    loop: start=0, step=1, limit=4
    $region2: #{tpu_custom_call.1} parent=1 // loop_pre_header
      _
    $region3: #{tpu_custom_call.1} parent=1 // loop_header
      %s24 = sphi 0, %s28
      %p25 = scmp.ge.s32.totalorder %s24, 4
      %s34 = sphi 0, %s36
      %s37 = sphi 0, %s34
      %s38 = sphi 0, %s37
      %s54 = sphi 0, %s38
      %s60 = sphi 0, %s62
      %s63 = sphi 0, %s60
      %s64 = sphi 0, %s63
      %s80 = sphi 0, %s64
      %s86 = sphi 0, %s88
      %s89 = sphi 0, %s86
      %s90 = sphi 0, %s89
      %s106 = sphi 0, %s90
      %s112 = sphi 0, %s114
      %s115 = sphi 0, %s112
      %s116 = sphi 0, %s115
      %s132 = sphi 0, %s116
      %s138 = sphi 0, %s140
      %s141 = sphi 0, %s138
      %s142 = sphi 0, %s141
      %s158 = sphi 0, %s142
      %s164 = sphi 0, %s166
      %s167 = sphi 0, %s164
      %s168 = sphi 0, %s167
      %s184 = sphi 0, %s168
      %s190 = sphi 0, %s192
      %s193 = sphi 0, %s190
      %s194 = sphi 0, %s193
      %s210 = sphi 0, %s194
      %s216 = sphi 0, %s218
      %s219 = sphi 0, %s216
      %s220 = sphi 0, %s219
      %s236 = sphi 0, %s220
      %s242 = sphi 0, %s244
      %s245 = sphi 0, %s242
      %s246 = sphi 0, %s245
      %s262 = sphi 0, %s246
    $region4: #{tpu_custom_call.1} parent=1 // loop_header_branch
      %27 = sbr.rel (%p25) target = $region8
    $region5: #{tpu_custom_call.1} parent=1 // loop_body
      %s29 = ssub.s32 %s24, 1
      %s30 = ssub.s32 %s24, 2
      %s31 = sadd.s32 %s24, 1
      %s32 = ssub.s32 %s24, %s31
      %p33 = scmp.eq.s32.totalorder %s32, 0
      %s35 = sadd.s32 %s34, 1
      %s36 = scalar_select %p33, %s34, %s35
      %p39 = pneg %p33
      %p40 = scmp.eq.s32.totalorder %s24, 1
      %p41 = por %p39, %p40
      %p42 = scmp.ne.s32.totalorder %s34, %s37
      %p43 = scmp.eq.s32.totalorder %s24, 0
      %p44 = por %p42, %p43
      %p45 = scmp.ne.s32.totalorder %s34, %s37
      %p46 = scmp.eq.s32.totalorder %s29, 1
      %p47 = por %p45, %p46
      %p48 = scmp.ne.s32.totalorder %s37, %s38
      %p49 = scmp.eq.s32.totalorder %s29, 0
      %p50 = por %p48, %p49
      %p51 = scmp.ne.s32.totalorder %s37, %s38
      %p52 = scmp.eq.s32.totalorder %s30, 1
      %p53 = por %p51, %p52
      %p55 = scmp.ne.s32.totalorder %s38, %s54
      %p56 = scmp.eq.s32.totalorder %s30, 0
      %p57 = por %p55, %p56
      %s58 = ssub.s32 %s24, %s31
      %p59 = scmp.eq.s32.totalorder %s58, 0
      %s61 = sadd.s32 %s60, 1
      %s62 = scalar_select %p59, %s60, %s61
      %p65 = pneg %p59
      %p66 = scmp.eq.s32.totalorder %s24, 1
      %p67 = por %p65, %p66
      %p68 = scmp.ne.s32.totalorder %s60, %s63
      %p69 = scmp.eq.s32.totalorder %s24, 0
      %p70 = por %p68, %p69
      %p71 = scmp.ne.s32.totalorder %s60, %s63
      %p72 = scmp.eq.s32.totalorder %s29, 1
      %p73 = por %p71, %p72
      %p74 = scmp.ne.s32.totalorder %s63, %s64
      %p75 = scmp.eq.s32.totalorder %s29, 0
      %p76 = por %p74, %p75
      %p77 = scmp.ne.s32.totalorder %s63, %s64
      %p78 = scmp.eq.s32.totalorder %s30, 1
      %p79 = por %p77, %p78
      %p81 = scmp.ne.s32.totalorder %s64, %s80
      %p82 = scmp.eq.s32.totalorder %s30, 0
      %p83 = por %p81, %p82
      %s84 = ssub.s32 %s24, %s31
      %p85 = scmp.eq.s32.totalorder %s84, 0
      %s87 = sadd.s32 %s86, 1
      %s88 = scalar_select %p85, %s86, %s87
      %p91 = pneg %p85
      %p92 = scmp.eq.s32.totalorder %s24, 1
      %p93 = por %p91, %p92
      %p94 = scmp.ne.s32.totalorder %s86, %s89
      %p95 = scmp.eq.s32.totalorder %s24, 0
      %p96 = por %p94, %p95
      %p97 = scmp.ne.s32.totalorder %s86, %s89
      %p98 = scmp.eq.s32.totalorder %s29, 1
      %p99 = por %p97, %p98
      %p100 = scmp.ne.s32.totalorder %s89, %s90
      %p101 = scmp.eq.s32.totalorder %s29, 0
      %p102 = por %p100, %p101
      %p103 = scmp.ne.s32.totalorder %s89, %s90
      %p104 = scmp.eq.s32.totalorder %s30, 1
      %p105 = por %p103, %p104
      %p107 = scmp.ne.s32.totalorder %s90, %s106
      %p108 = scmp.eq.s32.totalorder %s30, 0
      %p109 = por %p107, %p108
      %s110 = ssub.s32 %s24, %s31
      %p111 = scmp.eq.s32.totalorder %s110, 0
      %s113 = sadd.s32 %s112, 1
      %s114 = scalar_select %p111, %s112, %s113
      %p117 = pneg %p111
      %p118 = scmp.eq.s32.totalorder %s24, 1
      %p119 = por %p117, %p118
      %p120 = scmp.ne.s32.totalorder %s112, %s115
      %p121 = scmp.eq.s32.totalorder %s24, 0
      %p122 = por %p120, %p121
      %p123 = scmp.ne.s32.totalorder %s112, %s115
      %p124 = scmp.eq.s32.totalorder %s29, 1
      %p125 = por %p123, %p124
      %p126 = scmp.ne.s32.totalorder %s115, %s116
      %p127 = scmp.eq.s32.totalorder %s29, 0
      %p128 = por %p126, %p127
      %p129 = scmp.ne.s32.totalorder %s115, %s116
      %p130 = scmp.eq.s32.totalorder %s30, 1
      %p131 = por %p129, %p130
      %p133 = scmp.ne.s32.totalorder %s116, %s132
      %p134 = scmp.eq.s32.totalorder %s30, 0
      %p135 = por %p133, %p134
      %s136 = ssub.s32 %s24, %s31
      %p137 = scmp.eq.s32.totalorder %s136, 0
      %s139 = sadd.s32 %s138, 1
      %s140 = scalar_select %p137, %s138, %s139
      %p143 = pneg %p137
      %p144 = scmp.eq.s32.totalorder %s24, 1
      %p145 = por %p143, %p144
      %p146 = scmp.ne.s32.totalorder %s138, %s141
      %p147 = scmp.eq.s32.totalorder %s24, 0
      %p148 = por %p146, %p147
      %p149 = scmp.ne.s32.totalorder %s138, %s141
      %p150 = scmp.eq.s32.totalorder %s29, 1
      %p151 = por %p149, %p150
      %p152 = scmp.ne.s32.totalorder %s141, %s142
      %p153 = scmp.eq.s32.totalorder %s29, 0
      %p154 = por %p152, %p153
      %p155 = scmp.ne.s32.totalorder %s141, %s142
      %p156 = scmp.eq.s32.totalorder %s30, 1
      %p157 = por %p155, %p156
      %p159 = scmp.ne.s32.totalorder %s142, %s158
      %p160 = scmp.eq.s32.totalorder %s30, 0
      %p161 = por %p159, %p160
      %s162 = ssub.s32 %s24, %s31
      %p163 = scmp.eq.s32.totalorder %s162, 0
      %s165 = sadd.s32 %s164, 1
      %s166 = scalar_select %p163, %s164, %s165
      %p169 = pneg %p163
      %p170 = scmp.eq.s32.totalorder %s24, 1
      %p171 = por %p169, %p170
      %p172 = scmp.ne.s32.totalorder %s164, %s167
      %p173 = scmp.eq.s32.totalorder %s24, 0
      %p174 = por %p172, %p173
      %p175 = scmp.ne.s32.totalorder %s164, %s167
      %p176 = scmp.eq.s32.totalorder %s29, 1
      %p177 = por %p175, %p176
      %p178 = scmp.ne.s32.totalorder %s167, %s168
      %p179 = scmp.eq.s32.totalorder %s29, 0
      %p180 = por %p178, %p179
      %p181 = scmp.ne.s32.totalorder %s167, %s168
      %p182 = scmp.eq.s32.totalorder %s30, 1
      %p183 = por %p181, %p182
      %p185 = scmp.ne.s32.totalorder %s168, %s184
      %p186 = scmp.eq.s32.totalorder %s30, 0
      %p187 = por %p185, %p186
      %s188 = ssub.s32 %s24, %s31
      %p189 = scmp.eq.s32.totalorder %s188, 0
      %s191 = sadd.s32 %s190, 1
      %s192 = scalar_select %p189, %s190, %s191
      %p195 = pneg %p189
      %p196 = scmp.eq.s32.totalorder %s24, 1
      %p197 = por %p195, %p196
      %p198 = scmp.ne.s32.totalorder %s190, %s193
      %p199 = scmp.eq.s32.totalorder %s24, 0
      %p200 = por %p198, %p199
      %p201 = scmp.ne.s32.totalorder %s190, %s193
      %p202 = scmp.eq.s32.totalorder %s29, 1
      %p203 = por %p201, %p202
      %p204 = scmp.ne.s32.totalorder %s193, %s194
      %p205 = scmp.eq.s32.totalorder %s29, 0
      %p206 = por %p204, %p205
      %p207 = scmp.ne.s32.totalorder %s193, %s194
      %p208 = scmp.eq.s32.totalorder %s30, 1
      %p209 = por %p207, %p208
      %p211 = scmp.ne.s32.totalorder %s194, %s210
      %p212 = scmp.eq.s32.totalorder %s30, 0
      %p213 = por %p211, %p212
      %s214 = ssub.s32 %s24, %s31
      %p215 = scmp.eq.s32.totalorder %s214, 0
      %s217 = sadd.s32 %s216, 1
      %s218 = scalar_select %p215, %s216, %s217
      %p221 = pneg %p215
      %p222 = scmp.eq.s32.totalorder %s24, 1
      %p223 = por %p221, %p222
      %p224 = scmp.ne.s32.totalorder %s216, %s219
      %p225 = scmp.eq.s32.totalorder %s24, 0
      %p226 = por %p224, %p225
      %p227 = scmp.ne.s32.totalorder %s216, %s219
      %p228 = scmp.eq.s32.totalorder %s29, 1
      %p229 = por %p227, %p228
      %p230 = scmp.ne.s32.totalorder %s219, %s220
      %p231 = scmp.eq.s32.totalorder %s29, 0
      %p232 = por %p230, %p231
      %p233 = scmp.ne.s32.totalorder %s219, %s220
      %p234 = scmp.eq.s32.totalorder %s30, 1
      %p235 = por %p233, %p234
      %p237 = scmp.ne.s32.totalorder %s220, %s236
      %p238 = scmp.eq.s32.totalorder %s30, 0
      %p239 = por %p237, %p238
      %s240 = ssub.s32 %s24, %s31
      %p241 = scmp.eq.s32.totalorder %s240, 0
      %s243 = sadd.s32 %s242, 1
      %s244 = scalar_select %p241, %s242, %s243
      %p247 = pneg %p241
      %p248 = scmp.eq.s32.totalorder %s24, 1
      %p249 = por %p247, %p248
      %p250 = scmp.ne.s32.totalorder %s242, %s245
      %p251 = scmp.eq.s32.totalorder %s24, 0
      %p252 = por %p250, %p251
      %p253 = scmp.ne.s32.totalorder %s242, %s245
      %p254 = scmp.eq.s32.totalorder %s29, 1
      %p255 = por %p253, %p254
      %p256 = scmp.ne.s32.totalorder %s245, %s246
      %p257 = scmp.eq.s32.totalorder %s29, 0
      %p258 = por %p256, %p257
      %p259 = scmp.ne.s32.totalorder %s245, %s246
      %p260 = scmp.eq.s32.totalorder %s30, 1
      %p261 = por %p259, %p260
      %p263 = scmp.ne.s32.totalorder %s246, %s262
      %p264 = scmp.eq.s32.totalorder %s30, 0
      %p265 = por %p263, %p264
      %p266 = scmp.le.s32.totalorder 1, %s24
      %p267 = scmp.lt.s32.totalorder %s24, 3
      %p268 = pnand %p266, %p267
      %p269 = pneg %p268
      // Predicated region
      $region9: #{tpu_custom_call.1} parent=5 // pred_check
        _
      $region10: #{tpu_custom_call.1} parent=5 // pred_check_branch
        %271 = sbr.rel (%p268) target = $region12
      $region11: #{tpu_custom_call.1} parent=5 // pred_region
        %s272 = ssub.s32 %s24, 1
      $region12: #{tpu_custom_call.1} parent=5 // pred_fallthru
        _
      %p273 = scmp.lt.s32.totalorder %s24, 2
      // Predicated region
      $region13: #{tpu_custom_call.1} parent=5 // pred_check
        %p274 = pneg %p273
      $region14: #{tpu_custom_call.1} parent=5 // pred_check_branch
        %276 = sbr.rel (%p274) target = $region16
      $region15: #{tpu_custom_call.1} parent=5 // pred_region
        // Predicated region
        $region17: #{tpu_custom_call.1} parent=15 // pred_check
          %p277 = pneg %p44
        $region18: #{tpu_custom_call.1} parent=15 // pred_check_branch
          %279 = sbr.rel (%p277) target = $region20
        $region19: #{tpu_custom_call.1} parent=15 // pred_region
          %s280 = sand.u32 %s34, 1
          %s281 = scalar_lea.sflag [#allocation3], %s280
          %s282 = sand.u32 %s34, 1
          %s283 = smul.addr %s282, 512
          %s284 = scalar_lea.vmem [#allocation2], %s283
          %s285 = smul.u32 64, %s24
          %287 = vsyncadd %s281, 0
          %s288 = smul.addr %s285, 8
          %s289 = scalar_lea.hbm %s0, %s288
          %s290 = sshll.u32 %s289, 4
          %s291 = int_to_ptr.hbm [resolvable:$true] %s290
          %s292 = sshll.u32 %s284, 4
          %s293 = int_to_ptr.vmem [resolvable:$true] %s292
          %298 = dma.hbm_to_vmem [thread:$0]  %s291, 8192, %s293, %s281, 128, 128, 8
        $region20: #{tpu_custom_call.1} parent=15 // pred_fallthru
          _
        // Predicated region
        $region21: #{tpu_custom_call.1} parent=15 // pred_check
          %p299 = pneg %p70
        $region22: #{tpu_custom_call.1} parent=15 // pred_check_branch
          %301 = sbr.rel (%p299) target = $region24
        $region23: #{tpu_custom_call.1} parent=15 // pred_region
          %s302 = sand.u32 %s24, 1
          %s303 = scalar_lea.sflag [#allocation5], %s302
          %s304 = sand.u32 %s60, 1
          %s305 = smul.addr %s304, 512
          %s306 = scalar_lea.vmem [#allocation4], %s305
          %s307 = smul.u32 64, %s24
          %309 = vsyncadd %s303, 0
          %s310 = smul.addr %s307, 8
          %s311 = scalar_lea.hbm %s1, %s310
          %s312 = sshll.u32 %s311, 4
          %s313 = int_to_ptr.hbm [resolvable:$true] %s312
          %s314 = sshll.u32 %s306, 4
          %s315 = int_to_ptr.vmem [resolvable:$true] %s314
          %320 = dma.hbm_to_vmem [thread:$0]  %s313, 8192, %s315, %s303, 128, 128, 8
        $region24: #{tpu_custom_call.1} parent=15 // pred_fallthru
          _
        // Predicated region
        $region25: #{tpu_custom_call.1} parent=15 // pred_check
          %p321 = pneg %p96
        $region26: #{tpu_custom_call.1} parent=15 // pred_check_branch
          %323 = sbr.rel (%p321) target = $region28
        $region27: #{tpu_custom_call.1} parent=15 // pred_region
          %s324 = sand.u32 %s24, 1
          %s325 = scalar_lea.sflag [#allocation5], %s324
          %s326 = sand.u32 %s86, 1
          %s327 = smul.addr %s326, 512
          %s328 = scalar_lea.vmem [#allocation6], %s327
          %s329 = smul.u32 64, %s24
          %331 = vsyncadd %s325, 0
          %s332 = smul.addr %s329, 8
          %s333 = scalar_lea.hbm %s2, %s332
          %s334 = sshll.u32 %s333, 4
          %s335 = int_to_ptr.hbm [resolvable:$true] %s334
          %s336 = sshll.u32 %s328, 4
          %s337 = int_to_ptr.vmem [resolvable:$true] %s336
          %342 = dma.hbm_to_vmem [thread:$0]  %s335, 8192, %s337, %s325, 128, 128, 8
        $region28: #{tpu_custom_call.1} parent=15 // pred_fallthru
          _
        // Predicated region
        $region29: #{tpu_custom_call.1} parent=15 // pred_check
          %p343 = pneg %p122
        $region30: #{tpu_custom_call.1} parent=15 // pred_check_branch
          %345 = sbr.rel (%p343) target = $region32
        $region31: #{tpu_custom_call.1} parent=15 // pred_region
          %s346 = sand.u32 %s24, 1
          %s347 = scalar_lea.sflag [#allocation8], %s346
          %s348 = sand.u32 %s112, 1
          %s349 = smul.addr %s348, 512
          %s350 = scalar_lea.vmem [#allocation7], %s349
          %s351 = smul.u32 64, %s24
          %353 = vsyncadd %s347, 0
          %s354 = smul.addr %s351, 8
          %s355 = scalar_lea.hbm %s3, %s354
          %s356 = sshll.u32 %s355, 4
          %s357 = int_to_ptr.hbm [resolvable:$true] %s356
          %s358 = sshll.u32 %s350, 4
          %s359 = int_to_ptr.vmem [resolvable:$true] %s358
          %364 = dma.hbm_to_vmem [thread:$0]  %s357, 8192, %s359, %s347, 128, 128, 8
        $region32: #{tpu_custom_call.1} parent=15 // pred_fallthru
          _
        // Predicated region
        $region33: #{tpu_custom_call.1} parent=15 // pred_check
          %p365 = pneg %p148
        $region34: #{tpu_custom_call.1} parent=15 // pred_check_branch
          %367 = sbr.rel (%p365) target = $region36
        $region35: #{tpu_custom_call.1} parent=15 // pred_region
          %s368 = sand.u32 %s24, 1
          %s369 = scalar_lea.sflag [#allocation8], %s368
          %s370 = sand.u32 %s138, 1
          %s371 = smul.addr %s370, 512
          %s372 = scalar_lea.vmem [#allocation9], %s371
          %s373 = smul.u32 64, %s24
          %375 = vsyncadd %s369, 0
          %s376 = smul.addr %s373, 8
          %s377 = scalar_lea.hbm %s4, %s376
          %s378 = sshll.u32 %s377, 4
          %s379 = int_to_ptr.hbm [resolvable:$true] %s378
          %s380 = sshll.u32 %s372, 4
          %s381 = int_to_ptr.vmem [resolvable:$true] %s380
          %386 = dma.hbm_to_vmem [thread:$0]  %s379, 8192, %s381, %s369, 128, 128, 8
        $region36: #{tpu_custom_call.1} parent=15 // pred_fallthru
          _
      $region16: #{tpu_custom_call.1} parent=5 // pred_fallthru
        _
      %p387 = scmp.le.s32.totalorder 1, %s24
      %p388 = scmp.lt.s32.totalorder %s24, 3
      %p389 = pnand %p387, %p388
      %p390 = pneg %p389
      // Predicated region
      $region37: #{tpu_custom_call.1} parent=5 // pred_check
        _
      $region38: #{tpu_custom_call.1} parent=5 // pred_check_branch
        %392 = sbr.rel (%p389) target = $region40
      $region39: #{tpu_custom_call.1} parent=5 // pred_region
        %s393 = ssub.s32 %s24, 1
        %s394 = sand.u32 %s37, 1
        %s395 = scalar_lea.sflag [#allocation3], %s394
        %s396 = sand.u32 %s37, 1
        %s397 = smul.addr %s396, 512
        %s398 = scalar_lea.vmem [#allocation2], %s397
        // Predicated region
        $region41: #{tpu_custom_call.1} parent=39 // pred_check
          %p399 = pneg %p50
        $region42: #{tpu_custom_call.1} parent=39 // pred_check_branch
          %401 = sbr.rel (%p399) target = $region44
        $region43: #{tpu_custom_call.1} parent=39 // pred_region
          %403 = dma.done %s395, 8192
        $region44: #{tpu_custom_call.1} parent=39 // pred_fallthru
          _
        %s404 = sand.u32 %s29, 1
        %s405 = scalar_lea.sflag [#allocation5], %s404
        %s406 = sand.u32 %s63, 1
        %s407 = smul.addr %s406, 512
        %s408 = scalar_lea.vmem [#allocation4], %s407
        // Predicated region
        $region45: #{tpu_custom_call.1} parent=39 // pred_check
          %p409 = pneg %p76
        $region46: #{tpu_custom_call.1} parent=39 // pred_check_branch
          %411 = sbr.rel (%p409) target = $region48
        $region47: #{tpu_custom_call.1} parent=39 // pred_region
          %413 = dma.done %s405, 8192
        $region48: #{tpu_custom_call.1} parent=39 // pred_fallthru
          _
        %s414 = sand.u32 %s29, 1
        %s415 = scalar_lea.sflag [#allocation5], %s414
        %s416 = sand.u32 %s89, 1
        %s417 = smul.addr %s416, 512
        %s418 = scalar_lea.vmem [#allocation6], %s417
        // Predicated region
        $region49: #{tpu_custom_call.1} parent=39 // pred_check
          %p419 = pneg %p102
        $region50: #{tpu_custom_call.1} parent=39 // pred_check_branch
          %421 = sbr.rel (%p419) target = $region52
        $region51: #{tpu_custom_call.1} parent=39 // pred_region
          %423 = dma.done %s415, 8192
        $region52: #{tpu_custom_call.1} parent=39 // pred_fallthru
          _
        %s424 = sand.u32 %s29, 1
        %s425 = scalar_lea.sflag [#allocation8], %s424
        %s426 = sand.u32 %s115, 1
        %s427 = smul.addr %s426, 512
        %s428 = scalar_lea.vmem [#allocation7], %s427
        // Predicated region
        $region53: #{tpu_custom_call.1} parent=39 // pred_check
          %p429 = pneg %p128
        $region54: #{tpu_custom_call.1} parent=39 // pred_check_branch
          %431 = sbr.rel (%p429) target = $region56
        $region55: #{tpu_custom_call.1} parent=39 // pred_region
          %433 = dma.done %s425, 8192
        $region56: #{tpu_custom_call.1} parent=39 // pred_fallthru
          _
        %s434 = sand.u32 %s29, 1
        %s435 = scalar_lea.sflag [#allocation8], %s434
        %s436 = sand.u32 %s141, 1
        %s437 = smul.addr %s436, 512
        %s438 = scalar_lea.vmem [#allocation9], %s437
        // Predicated region
        $region57: #{tpu_custom_call.1} parent=39 // pred_check
          %p439 = pneg %p154
        $region58: #{tpu_custom_call.1} parent=39 // pred_check_branch
          %441 = sbr.rel (%p439) target = $region60
        $region59: #{tpu_custom_call.1} parent=39 // pred_region
          %443 = dma.done %s435, 8192
        $region60: #{tpu_custom_call.1} parent=39 // pred_fallthru
          _
        %s444 = sand.u32 %s37, 1
        %s445 = scalar_lea.sflag [#allocation3], %s444
        %s446 = sand.u32 %s37, 1
        %s447 = smul.addr %s446, 512
        %s448 = scalar_lea.vmem [#allocation2], %s447
        %p449 = pneg %p50
        %p450 = pneg %p47
        %s451 = sand.u32 %s29, 1
        %s452 = scalar_lea.sflag [#allocation5], %s451
        %s453 = sand.u32 %s63, 1
        %s454 = smul.addr %s453, 512
        %s455 = scalar_lea.vmem [#allocation4], %s454
        %p456 = pneg %p76
        %p457 = pneg %p73
        %s458 = sand.u32 %s29, 1
        %s459 = scalar_lea.sflag [#allocation5], %s458
        %s460 = sand.u32 %s89, 1
        %s461 = smul.addr %s460, 512
        %s462 = scalar_lea.vmem [#allocation6], %s461
        %p463 = pneg %p102
        %p464 = pneg %p99
        %s465 = sand.u32 %s29, 1
        %s466 = scalar_lea.sflag [#allocation8], %s465
        %s467 = sand.u32 %s115, 1
        %s468 = smul.addr %s467, 512
        %s469 = scalar_lea.vmem [#allocation7], %s468
        %p470 = pneg %p128
        %p471 = pneg %p125
        %s472 = sand.u32 %s29, 1
        %s473 = scalar_lea.sflag [#allocation8], %s472
        %s474 = sand.u32 %s141, 1
        %s475 = smul.addr %s474, 512
        %s476 = scalar_lea.vmem [#allocation9], %s475
        %p477 = pneg %p154
        %p478 = pneg %p151
        %p479 = pneg %p180
        %p480 = pneg %p177
        %s481 = smul.u32 64, %s29
        %p482 = scmp.lt.s32.totalorder %s481, 127
        %s483 = scalar_select %p482, %s481, 127
        %s484 = smul.addr %s483, 8
        %s485 = scalar_lea.vmem %s5, %s484
        %p486 = pneg %p206
        %p487 = pneg %p203
        %s488 = smul.u32 64, %s29
        %p489 = scmp.lt.s32.totalorder %s488, 127
        %s490 = scalar_select %p489, %s488, 127
        %s491 = smul.addr %s490, 8
        %s492 = scalar_lea.vmem %s6, %s491
        %p493 = pneg %p232
        %p494 = pneg %p229
        %s495 = smul.u32 64, %s29
        %p496 = scmp.lt.s32.totalorder %s495, 127
        %s497 = scalar_select %p496, %s495, 127
        %s498 = smul.addr %s497, 8
        %s499 = scalar_lea.vmem %s7, %s498
        %p500 = pneg %p258
        %p501 = pneg %p255
        %s502 = smul.u32 64, %s29
        %p503 = scmp.lt.s32.totalorder %s502, 127
        %s504 = scalar_select %p503, %s502, 127
        %s505 = smul.addr %s504, 8
        %s506 = scalar_lea.vmem %s8, %s505
        %s507 = smul.u32 64, %s29
        %s508 = smul.u32 64, %s29
        %s509 = smul.u32 64, %s29
        %s510 = smul.u32 64, %s29
        %s511 = smul.u32 64, %s29
        %s512 = smul.u32 64, %s29
        %p513 = scmp.lt.s32.totalorder %s512, 127
        %s514 = scalar_select %p513, %s512, 127
        %s515 = smul.addr %s514, 8
        %s516 = scalar_lea.vmem %s5, %s515
        %s517 = smul.u32 64, %s29
        %s518 = smul.u32 64, %s29
        %p519 = scmp.lt.s32.totalorder %s518, 127
        %s520 = scalar_select %p519, %s518, 127
        %s521 = smul.addr %s520, 8
        %s522 = scalar_lea.vmem %s6, %s521
        %s523 = smul.u32 64, %s29
        %s524 = smul.u32 64, %s29
        %p525 = scmp.lt.s32.totalorder %s524, 127
        %s526 = scalar_select %p525, %s524, 127
        %s527 = smul.addr %s526, 8
        %s528 = scalar_lea.vmem %s7, %s527
        %s529 = smul.u32 64, %s29
        %s530 = smul.u32 64, %s29
        %p531 = scmp.lt.s32.totalorder %s530, 127
        %s532 = scalar_select %p531, %s530, 127
        %s533 = smul.addr %s532, 8
        %s534 = scalar_lea.vmem %s8, %s533
        %s535 = smul.u32 64, %s29
        %v536 = vld [vmem:[%s398] sm:$0xff]
        %v537 = vld [vmem:[%s398 + $0x8] sm:$0xff]
        %v538 = vld [vmem:[%s398 + $0x10] sm:$0xff]
        %v539 = vld [vmem:[%s398 + $0x18] sm:$0xff]
        %v540 = vld [vmem:[%s398 + $0x20] sm:$0xff]
        %v541 = vld [vmem:[%s398 + $0x28] sm:$0xff]
        %v542 = vld [vmem:[%s398 + $0x30] sm:$0xff]
        %v543 = vld [vmem:[%s398 + $0x38] sm:$0xff]
        %v544 = vld [vmem:[%s398 + $0x40] sm:$0xff]
        %v545 = vld [vmem:[%s398 + $0x48] sm:$0xff]
        %v546 = vld [vmem:[%s398 + $0x50] sm:$0xff]
        %v547 = vld [vmem:[%s398 + $0x58] sm:$0xff]
        %v548 = vld [vmem:[%s398 + $0x60] sm:$0xff]
        %v549 = vld [vmem:[%s398 + $0x68] sm:$0xff]
        %v550 = vld [vmem:[%s398 + $0x70] sm:$0xff]
        %v551 = vld [vmem:[%s398 + $0x78] sm:$0xff]
        %v552 = vld [vmem:[%s398 + $0x80] sm:$0xff]
        %v553 = vld [vmem:[%s398 + $0x88] sm:$0xff]
        %v554 = vld [vmem:[%s398 + $0x90] sm:$0xff]
        %v555 = vld [vmem:[%s398 + $0x98] sm:$0xff]
        %v556 = vld [vmem:[%s398 + $0xa0] sm:$0xff]
        %v557 = vld [vmem:[%s398 + $0xa8] sm:$0xff]
        %v558 = vld [vmem:[%s398 + $0xb0] sm:$0xff]
        %v559 = vld [vmem:[%s398 + $0xb8] sm:$0xff]
        %v560 = vld [vmem:[%s398 + $0xc0] sm:$0xff]
        %v561 = vld [vmem:[%s398 + $0xc8] sm:$0xff]
        %v562 = vld [vmem:[%s398 + $0xd0] sm:$0xff]
        %v563 = vld [vmem:[%s398 + $0xd8] sm:$0xff]
        %v564 = vld [vmem:[%s398 + $0xe0] sm:$0xff]
        %v565 = vld [vmem:[%s398 + $0xe8] sm:$0xff]
        %v566 = vld [vmem:[%s398 + $0xf0] sm:$0xff]
        %v567 = vld [vmem:[%s398 + $0xf8] sm:$0xff]
        %v568 = vld [vmem:[%s398 + $0x100] sm:$0xff]
        %v569 = vld [vmem:[%s398 + $0x108] sm:$0xff]
        %v570 = vld [vmem:[%s398 + $0x110] sm:$0xff]
        %v571 = vld [vmem:[%s398 + $0x118] sm:$0xff]
        %v572 = vld [vmem:[%s398 + $0x120] sm:$0xff]
        %v573 = vld [vmem:[%s398 + $0x128] sm:$0xff]
        %v574 = vld [vmem:[%s398 + $0x130] sm:$0xff]
        %v575 = vld [vmem:[%s398 + $0x138] sm:$0xff]
        %v576 = vld [vmem:[%s398 + $0x140] sm:$0xff]
        %v577 = vld [vmem:[%s398 + $0x148] sm:$0xff]
        %v578 = vld [vmem:[%s398 + $0x150] sm:$0xff]
        %v579 = vld [vmem:[%s398 + $0x158] sm:$0xff]
        %v580 = vld [vmem:[%s398 + $0x160] sm:$0xff]
        %v581 = vld [vmem:[%s398 + $0x168] sm:$0xff]
        %v582 = vld [vmem:[%s398 + $0x170] sm:$0xff]
        %v583 = vld [vmem:[%s398 + $0x178] sm:$0xff]
        %v584 = vld [vmem:[%s398 + $0x180] sm:$0xff]
        %v585 = vld [vmem:[%s398 + $0x188] sm:$0xff]
        %v586 = vld [vmem:[%s398 + $0x190] sm:$0xff]
        %v587 = vld [vmem:[%s398 + $0x198] sm:$0xff]
        %v588 = vld [vmem:[%s398 + $0x1a0] sm:$0xff]
        %v589 = vld [vmem:[%s398 + $0x1a8] sm:$0xff]
        %v590 = vld [vmem:[%s398 + $0x1b0] sm:$0xff]
        %v591 = vld [vmem:[%s398 + $0x1b8] sm:$0xff]
        %v592 = vld [vmem:[%s398 + $0x1c0] sm:$0xff]
        %v593 = vld [vmem:[%s398 + $0x1c8] sm:$0xff]
        %v594 = vld [vmem:[%s398 + $0x1d0] sm:$0xff]
        %v595 = vld [vmem:[%s398 + $0x1d8] sm:$0xff]
        %v596 = vld [vmem:[%s398 + $0x1e0] sm:$0xff]
        %v597 = vld [vmem:[%s398 + $0x1e8] sm:$0xff]
        %v598 = vld [vmem:[%s398 + $0x1f0] sm:$0xff]
        %v599 = vld [vmem:[%s398 + $0x1f8] sm:$0xff]
        %v600 = vld [vmem:[%s408] sm:$0xff]
        %v601 = vld [vmem:[%s408 + $0x8] sm:$0xff]
        %v602 = vld [vmem:[%s408 + $0x10] sm:$0xff]
        %v603 = vld [vmem:[%s408 + $0x18] sm:$0xff]
        %v604 = vld [vmem:[%s408 + $0x20] sm:$0xff]
        %v605 = vld [vmem:[%s408 + $0x28] sm:$0xff]
        %v606 = vld [vmem:[%s408 + $0x30] sm:$0xff]
        %v607 = vld [vmem:[%s408 + $0x38] sm:$0xff]
        %v608 = vld [vmem:[%s408 + $0x40] sm:$0xff]
        %v609 = vld [vmem:[%s408 + $0x48] sm:$0xff]
        %v610 = vld [vmem:[%s408 + $0x50] sm:$0xff]
        %v611 = vld [vmem:[%s408 + $0x58] sm:$0xff]
        %v612 = vld [vmem:[%s408 + $0x60] sm:$0xff]
        %v613 = vld [vmem:[%s408 + $0x68] sm:$0xff]
        %v614 = vld [vmem:[%s408 + $0x70] sm:$0xff]
        %v615 = vld [vmem:[%s408 + $0x78] sm:$0xff]
        %v616 = vld [vmem:[%s408 + $0x80] sm:$0xff]
        %v617 = vld [vmem:[%s408 + $0x88] sm:$0xff]
        %v618 = vld [vmem:[%s408 + $0x90] sm:$0xff]
        %v619 = vld [vmem:[%s408 + $0x98] sm:$0xff]
        %v620 = vld [vmem:[%s408 + $0xa0] sm:$0xff]
        %v621 = vld [vmem:[%s408 + $0xa8] sm:$0xff]
        %v622 = vld [vmem:[%s408 + $0xb0] sm:$0xff]
        %v623 = vld [vmem:[%s408 + $0xb8] sm:$0xff]
        %v624 = vld [vmem:[%s408 + $0xc0] sm:$0xff]
        %v625 = vld [vmem:[%s408 + $0xc8] sm:$0xff]
        %v626 = vld [vmem:[%s408 + $0xd0] sm:$0xff]
        %v627 = vld [vmem:[%s408 + $0xd8] sm:$0xff]
        %v628 = vld [vmem:[%s408 + $0xe0] sm:$0xff]
        %v629 = vld [vmem:[%s408 + $0xe8] sm:$0xff]
        %v630 = vld [vmem:[%s408 + $0xf0] sm:$0xff]
        %v631 = vld [vmem:[%s408 + $0xf8] sm:$0xff]
        %v632 = vld [vmem:[%s408 + $0x100] sm:$0xff]
        %v633 = vld [vmem:[%s408 + $0x108] sm:$0xff]
        %v634 = vld [vmem:[%s408 + $0x110] sm:$0xff]
        %v635 = vld [vmem:[%s408 + $0x118] sm:$0xff]
        %v636 = vld [vmem:[%s408 + $0x120] sm:$0xff]
        %v637 = vld [vmem:[%s408 + $0x128] sm:$0xff]
        %v638 = vld [vmem:[%s408 + $0x130] sm:$0xff]
        %v639 = vld [vmem:[%s408 + $0x138] sm:$0xff]
        %v640 = vld [vmem:[%s408 + $0x140] sm:$0xff]
        %v641 = vld [vmem:[%s408 + $0x148] sm:$0xff]
        %v642 = vld [vmem:[%s408 + $0x150] sm:$0xff]
        %v643 = vld [vmem:[%s408 + $0x158] sm:$0xff]
        %v644 = vld [vmem:[%s408 + $0x160] sm:$0xff]
        %v645 = vld [vmem:[%s408 + $0x168] sm:$0xff]
        %v646 = vld [vmem:[%s408 + $0x170] sm:$0xff]
        %v647 = vld [vmem:[%s408 + $0x178] sm:$0xff]
        %v648 = vld [vmem:[%s408 + $0x180] sm:$0xff]
        %v649 = vld [vmem:[%s408 + $0x188] sm:$0xff]
        %v650 = vld [vmem:[%s408 + $0x190] sm:$0xff]
        %v651 = vld [vmem:[%s408 + $0x198] sm:$0xff]
        %v652 = vld [vmem:[%s408 + $0x1a0] sm:$0xff]
        %v653 = vld [vmem:[%s408 + $0x1a8] sm:$0xff]
        %v654 = vld [vmem:[%s408 + $0x1b0] sm:$0xff]
        %v655 = vld [vmem:[%s408 + $0x1b8] sm:$0xff]
        %v656 = vld [vmem:[%s408 + $0x1c0] sm:$0xff]
        %v657 = vld [vmem:[%s408 + $0x1c8] sm:$0xff]
        %v658 = vld [vmem:[%s408 + $0x1d0] sm:$0xff]
        %v659 = vld [vmem:[%s408 + $0x1d8] sm:$0xff]
        %v660 = vld [vmem:[%s408 + $0x1e0] sm:$0xff]
        %v661 = vld [vmem:[%s408 + $0x1e8] sm:$0xff]
        %v662 = vld [vmem:[%s408 + $0x1f0] sm:$0xff]
        %v663 = vld [vmem:[%s408 + $0x1f8] sm:$0xff]
        %v664 = vmul.f32 %v536, %v600
        %v665 = vmul.f32 %v537, %v601
        %v666 = vmul.f32 %v538, %v602
        %v667 = vmul.f32 %v539, %v603
        %v668 = vmul.f32 %v540, %v604
        %v669 = vmul.f32 %v541, %v605
        %v670 = vmul.f32 %v542, %v606
        %v671 = vmul.f32 %v543, %v607
        %v672 = vmul.f32 %v544, %v608
        %v673 = vmul.f32 %v545, %v609
        %v674 = vmul.f32 %v546, %v610
        %v675 = vmul.f32 %v547, %v611
        %v676 = vmul.f32 %v548, %v612
        %v677 = vmul.f32 %v549, %v613
        %v678 = vmul.f32 %v550, %v614
        %v679 = vmul.f32 %v551, %v615
        %v680 = vmul.f32 %v552, %v616
        %v681 = vmul.f32 %v553, %v617
        %v682 = vmul.f32 %v554, %v618
        %v683 = vmul.f32 %v555, %v619
        %v684 = vmul.f32 %v556, %v620
        %v685 = vmul.f32 %v557, %v621
        %v686 = vmul.f32 %v558, %v622
        %v687 = vmul.f32 %v559, %v623
        %v688 = vmul.f32 %v560, %v624
        %v689 = vmul.f32 %v561, %v625
        %v690 = vmul.f32 %v562, %v626
        %v691 = vmul.f32 %v563, %v627
        %v692 = vmul.f32 %v564, %v628
        %v693 = vmul.f32 %v565, %v629
        %v694 = vmul.f32 %v566, %v630
        %v695 = vmul.f32 %v567, %v631
        %v696 = vmul.f32 %v568, %v632
        %v697 = vmul.f32 %v569, %v633
        %v698 = vmul.f32 %v570, %v634
        %v699 = vmul.f32 %v571, %v635
        %v700 = vmul.f32 %v572, %v636
        %v701 = vmul.f32 %v573, %v637
        %v702 = vmul.f32 %v574, %v638
        %v703 = vmul.f32 %v575, %v639
        %v704 = vmul.f32 %v576, %v640
        %v705 = vmul.f32 %v577, %v641
        %v706 = vmul.f32 %v578, %v642
        %v707 = vmul.f32 %v579, %v643
        %v708 = vmul.f32 %v580, %v644
        %v709 = vmul.f32 %v581, %v645
        %v710 = vmul.f32 %v582, %v646
        %v711 = vmul.f32 %v583, %v647
        %v712 = vmul.f32 %v584, %v648
        %v713 = vmul.f32 %v585, %v649
        %v714 = vmul.f32 %v586, %v650
        %v715 = vmul.f32 %v587, %v651
        %v716 = vmul.f32 %v588, %v652
        %v717 = vmul.f32 %v589, %v653
        %v718 = vmul.f32 %v590, %v654
        %v719 = vmul.f32 %v591, %v655
        %v720 = vmul.f32 %v592, %v656
        %v721 = vmul.f32 %v593, %v657
        %v722 = vmul.f32 %v594, %v658
        %v723 = vmul.f32 %v595, %v659
        %v724 = vmul.f32 %v596, %v660
        %v725 = vmul.f32 %v597, %v661
        %v726 = vmul.f32 %v598, %v662
        %v727 = vmul.f32 %v599, %v663
        %728 = vadd.xlane.f32.xlu0 %v664
        %v729 = vpop.xlane.xlu0 %728
        %730 = vadd.xlane.f32.xlu0 %v665
        %v731 = vpop.xlane.xlu0 %730
        %732 = vadd.xlane.f32.xlu0 %v666
        %v733 = vpop.xlane.xlu0 %732
        %734 = vadd.xlane.f32.xlu0 %v667
        %v735 = vpop.xlane.xlu0 %734
        %736 = vadd.xlane.f32.xlu0 %v668
        %v737 = vpop.xlane.xlu0 %736
        %738 = vadd.xlane.f32.xlu0 %v669
        %v739 = vpop.xlane.xlu0 %738
        %740 = vadd.xlane.f32.xlu0 %v670
        %v741 = vpop.xlane.xlu0 %740
        %742 = vadd.xlane.f32.xlu0 %v671
        %v743 = vpop.xlane.xlu0 %742
        %744 = vadd.xlane.f32.xlu0 %v672
        %v745 = vpop.xlane.xlu0 %744
        %746 = vadd.xlane.f32.xlu0 %v673
        %v747 = vpop.xlane.xlu0 %746
        %748 = vadd.xlane.f32.xlu0 %v674
        %v749 = vpop.xlane.xlu0 %748
        %750 = vadd.xlane.f32.xlu0 %v675
        %v751 = vpop.xlane.xlu0 %750
        %752 = vadd.xlane.f32.xlu0 %v676
        %v753 = vpop.xlane.xlu0 %752
        %754 = vadd.xlane.f32.xlu0 %v677
        %v755 = vpop.xlane.xlu0 %754
        %756 = vadd.xlane.f32.xlu0 %v678
        %v757 = vpop.xlane.xlu0 %756
        %758 = vadd.xlane.f32.xlu0 %v679
        %v759 = vpop.xlane.xlu0 %758
        %760 = vadd.xlane.f32.xlu0 %v680
        %v761 = vpop.xlane.xlu0 %760
        %762 = vadd.xlane.f32.xlu0 %v681
        %v763 = vpop.xlane.xlu0 %762
        %764 = vadd.xlane.f32.xlu0 %v682
        %v765 = vpop.xlane.xlu0 %764
        %766 = vadd.xlane.f32.xlu0 %v683
        %v767 = vpop.xlane.xlu0 %766
        %768 = vadd.xlane.f32.xlu0 %v684
        %v769 = vpop.xlane.xlu0 %768
        %770 = vadd.xlane.f32.xlu0 %v685
        %v771 = vpop.xlane.xlu0 %770
        %772 = vadd.xlane.f32.xlu0 %v686
        %v773 = vpop.xlane.xlu0 %772
        %774 = vadd.xlane.f32.xlu0 %v687
        %v775 = vpop.xlane.xlu0 %774
        %776 = vadd.xlane.f32.xlu0 %v688
        %v777 = vpop.xlane.xlu0 %776
        %778 = vadd.xlane.f32.xlu0 %v689
        %v779 = vpop.xlane.xlu0 %778
        %780 = vadd.xlane.f32.xlu0 %v690
        %v781 = vpop.xlane.xlu0 %780
        %782 = vadd.xlane.f32.xlu0 %v691
        %v783 = vpop.xlane.xlu0 %782
        %784 = vadd.xlane.f32.xlu0 %v692
        %v785 = vpop.xlane.xlu0 %784
        %786 = vadd.xlane.f32.xlu0 %v693
        %v787 = vpop.xlane.xlu0 %786
        %788 = vadd.xlane.f32.xlu0 %v694
        %v789 = vpop.xlane.xlu0 %788
        %790 = vadd.xlane.f32.xlu0 %v695
        %v791 = vpop.xlane.xlu0 %790
        %792 = vadd.xlane.f32.xlu0 %v696
        %v793 = vpop.xlane.xlu0 %792
        %794 = vadd.xlane.f32.xlu0 %v697
        %v795 = vpop.xlane.xlu0 %794
        %796 = vadd.xlane.f32.xlu0 %v698
        %v797 = vpop.xlane.xlu0 %796
        %798 = vadd.xlane.f32.xlu0 %v699
        %v799 = vpop.xlane.xlu0 %798
        %800 = vadd.xlane.f32.xlu0 %v700
        %v801 = vpop.xlane.xlu0 %800
        %802 = vadd.xlane.f32.xlu0 %v701
        %v803 = vpop.xlane.xlu0 %802
        %804 = vadd.xlane.f32.xlu0 %v702
        %v805 = vpop.xlane.xlu0 %804
        %806 = vadd.xlane.f32.xlu0 %v703
        %v807 = vpop.xlane.xlu0 %806
        %808 = vadd.xlane.f32.xlu0 %v704
        %v809 = vpop.xlane.xlu0 %808
        %810 = vadd.xlane.f32.xlu0 %v705
        %v811 = vpop.xlane.xlu0 %810
        %812 = vadd.xlane.f32.xlu0 %v706
        %v813 = vpop.xlane.xlu0 %812
        %814 = vadd.xlane.f32.xlu0 %v707
        %v815 = vpop.xlane.xlu0 %814
        %816 = vadd.xlane.f32.xlu0 %v708
        %v817 = vpop.xlane.xlu0 %816
        %818 = vadd.xlane.f32.xlu0 %v709
        %v819 = vpop.xlane.xlu0 %818
        %820 = vadd.xlane.f32.xlu0 %v710
        %v821 = vpop.xlane.xlu0 %820
        %822 = vadd.xlane.f32.xlu0 %v711
        %v823 = vpop.xlane.xlu0 %822
        %824 = vadd.xlane.f32.xlu0 %v712
        %v825 = vpop.xlane.xlu0 %824
        %826 = vadd.xlane.f32.xlu0 %v713
        %v827 = vpop.xlane.xlu0 %826
        %828 = vadd.xlane.f32.xlu0 %v714
        %v829 = vpop.xlane.xlu0 %828
        %830 = vadd.xlane.f32.xlu0 %v715
        %v831 = vpop.xlane.xlu0 %830
        %832 = vadd.xlane.f32.xlu0 %v716
        %v833 = vpop.xlane.xlu0 %832
        %834 = vadd.xlane.f32.xlu0 %v717
        %v835 = vpop.xlane.xlu0 %834
        %836 = vadd.xlane.f32.xlu0 %v718
        %v837 = vpop.xlane.xlu0 %836
        %838 = vadd.xlane.f32.xlu0 %v719
        %v839 = vpop.xlane.xlu0 %838
        %840 = vadd.xlane.f32.xlu0 %v720
        %v841 = vpop.xlane.xlu0 %840
        %842 = vadd.xlane.f32.xlu0 %v721
        %v843 = vpop.xlane.xlu0 %842
        %844 = vadd.xlane.f32.xlu0 %v722
        %v845 = vpop.xlane.xlu0 %844
        %846 = vadd.xlane.f32.xlu0 %v723
        %v847 = vpop.xlane.xlu0 %846
        %848 = vadd.xlane.f32.xlu0 %v724
        %v849 = vpop.xlane.xlu0 %848
        %850 = vadd.xlane.f32.xlu0 %v725
        %v851 = vpop.xlane.xlu0 %850
        %852 = vadd.xlane.f32.xlu0 %v726
        %v853 = vpop.xlane.xlu0 %852
        %854 = vadd.xlane.f32.xlu0 %v727
        %v855 = vpop.xlane.xlu0 %854
        %vm856 = vcmask 7168
        %857 = vst.msk [vmem:[%s516] sm:$0xff] %vm856, %v729
        %858 = vst.msk [vmem:[%s516 + $0x8] sm:$0xff] %vm856, %v731
        %859 = vst.msk [vmem:[%s516 + $0x10] sm:$0xff] %vm856, %v733
        %860 = vst.msk [vmem:[%s516 + $0x18] sm:$0xff] %vm856, %v735
        %861 = vst.msk [vmem:[%s516 + $0x20] sm:$0xff] %vm856, %v737
        %862 = vst.msk [vmem:[%s516 + $0x28] sm:$0xff] %vm856, %v739
        %863 = vst.msk [vmem:[%s516 + $0x30] sm:$0xff] %vm856, %v741
        %864 = vst.msk [vmem:[%s516 + $0x38] sm:$0xff] %vm856, %v743
        %865 = vst.msk [vmem:[%s516 + $0x40] sm:$0xff] %vm856, %v745
        %866 = vst.msk [vmem:[%s516 + $0x48] sm:$0xff] %vm856, %v747
        %867 = vst.msk [vmem:[%s516 + $0x50] sm:$0xff] %vm856, %v749
        %868 = vst.msk [vmem:[%s516 + $0x58] sm:$0xff] %vm856, %v751
        %869 = vst.msk [vmem:[%s516 + $0x60] sm:$0xff] %vm856, %v753
        %870 = vst.msk [vmem:[%s516 + $0x68] sm:$0xff] %vm856, %v755
        %871 = vst.msk [vmem:[%s516 + $0x70] sm:$0xff] %vm856, %v757
        %872 = vst.msk [vmem:[%s516 + $0x78] sm:$0xff] %vm856, %v759
        %873 = vst.msk [vmem:[%s516 + $0x80] sm:$0xff] %vm856, %v761
        %874 = vst.msk [vmem:[%s516 + $0x88] sm:$0xff] %vm856, %v763
        %875 = vst.msk [vmem:[%s516 + $0x90] sm:$0xff] %vm856, %v765
        %876 = vst.msk [vmem:[%s516 + $0x98] sm:$0xff] %vm856, %v767
        %877 = vst.msk [vmem:[%s516 + $0xa0] sm:$0xff] %vm856, %v769
        %878 = vst.msk [vmem:[%s516 + $0xa8] sm:$0xff] %vm856, %v771
        %879 = vst.msk [vmem:[%s516 + $0xb0] sm:$0xff] %vm856, %v773
        %880 = vst.msk [vmem:[%s516 + $0xb8] sm:$0xff] %vm856, %v775
        %881 = vst.msk [vmem:[%s516 + $0xc0] sm:$0xff] %vm856, %v777
        %882 = vst.msk [vmem:[%s516 + $0xc8] sm:$0xff] %vm856, %v779
        %883 = vst.msk [vmem:[%s516 + $0xd0] sm:$0xff] %vm856, %v781
        %884 = vst.msk [vmem:[%s516 + $0xd8] sm:$0xff] %vm856, %v783
        %885 = vst.msk [vmem:[%s516 + $0xe0] sm:$0xff] %vm856, %v785
        %886 = vst.msk [vmem:[%s516 + $0xe8] sm:$0xff] %vm856, %v787
        %887 = vst.msk [vmem:[%s516 + $0xf0] sm:$0xff] %vm856, %v789
        %888 = vst.msk [vmem:[%s516 + $0xf8] sm:$0xff] %vm856, %v791
        %889 = vst.msk [vmem:[%s516 + $0x100] sm:$0xff] %vm856, %v793
        %890 = vst.msk [vmem:[%s516 + $0x108] sm:$0xff] %vm856, %v795
        %891 = vst.msk [vmem:[%s516 + $0x110] sm:$0xff] %vm856, %v797
        %892 = vst.msk [vmem:[%s516 + $0x118] sm:$0xff] %vm856, %v799
        %893 = vst.msk [vmem:[%s516 + $0x120] sm:$0xff] %vm856, %v801
        %894 = vst.msk [vmem:[%s516 + $0x128] sm:$0xff] %vm856, %v803
        %895 = vst.msk [vmem:[%s516 + $0x130] sm:$0xff] %vm856, %v805
        %896 = vst.msk [vmem:[%s516 + $0x138] sm:$0xff] %vm856, %v807
        %897 = vst.msk [vmem:[%s516 + $0x140] sm:$0xff] %vm856, %v809
        %898 = vst.msk [vmem:[%s516 + $0x148] sm:$0xff] %vm856, %v811
        %899 = vst.msk [vmem:[%s516 + $0x150] sm:$0xff] %vm856, %v813
        %900 = vst.msk [vmem:[%s516 + $0x158] sm:$0xff] %vm856, %v815
        %901 = vst.msk [vmem:[%s516 + $0x160] sm:$0xff] %vm856, %v817
        %902 = vst.msk [vmem:[%s516 + $0x168] sm:$0xff] %vm856, %v819
        %903 = vst.msk [vmem:[%s516 + $0x170] sm:$0xff] %vm856, %v821
        %904 = vst.msk [vmem:[%s516 + $0x178] sm:$0xff] %vm856, %v823
        %905 = vst.msk [vmem:[%s516 + $0x180] sm:$0xff] %vm856, %v825
        %906 = vst.msk [vmem:[%s516 + $0x188] sm:$0xff] %vm856, %v827
        %907 = vst.msk [vmem:[%s516 + $0x190] sm:$0xff] %vm856, %v829
        %908 = vst.msk [vmem:[%s516 + $0x198] sm:$0xff] %vm856, %v831
        %909 = vst.msk [vmem:[%s516 + $0x1a0] sm:$0xff] %vm856, %v833
        %910 = vst.msk [vmem:[%s516 + $0x1a8] sm:$0xff] %vm856, %v835
        %911 = vst.msk [vmem:[%s516 + $0x1b0] sm:$0xff] %vm856, %v837
        %912 = vst.msk [vmem:[%s516 + $0x1b8] sm:$0xff] %vm856, %v839
        %913 = vst.msk [vmem:[%s516 + $0x1c0] sm:$0xff] %vm856, %v841
        %914 = vst.msk [vmem:[%s516 + $0x1c8] sm:$0xff] %vm856, %v843
        %915 = vst.msk [vmem:[%s516 + $0x1d0] sm:$0xff] %vm856, %v845
        %916 = vst.msk [vmem:[%s516 + $0x1d8] sm:$0xff] %vm856, %v847
        %917 = vst.msk [vmem:[%s516 + $0x1e0] sm:$0xff] %vm856, %v849
        %918 = vst.msk [vmem:[%s516 + $0x1e8] sm:$0xff] %vm856, %v851
        %919 = vst.msk [vmem:[%s516 + $0x1f0] sm:$0xff] %vm856, %v853
        %920 = vst.msk [vmem:[%s516 + $0x1f8] sm:$0xff] %vm856, %v855
        %v921 = vld [vmem:[%s418] sm:$0xff]
        %v922 = vld [vmem:[%s418 + $0x8] sm:$0xff]
        %v923 = vld [vmem:[%s418 + $0x10] sm:$0xff]
        %v924 = vld [vmem:[%s418 + $0x18] sm:$0xff]
        %v925 = vld [vmem:[%s418 + $0x20] sm:$0xff]
        %v926 = vld [vmem:[%s418 + $0x28] sm:$0xff]
        %v927 = vld [vmem:[%s418 + $0x30] sm:$0xff]
        %v928 = vld [vmem:[%s418 + $0x38] sm:$0xff]
        %v929 = vld [vmem:[%s418 + $0x40] sm:$0xff]
        %v930 = vld [vmem:[%s418 + $0x48] sm:$0xff]
        %v931 = vld [vmem:[%s418 + $0x50] sm:$0xff]
        %v932 = vld [vmem:[%s418 + $0x58] sm:$0xff]
        %v933 = vld [vmem:[%s418 + $0x60] sm:$0xff]
        %v934 = vld [vmem:[%s418 + $0x68] sm:$0xff]
        %v935 = vld [vmem:[%s418 + $0x70] sm:$0xff]
        %v936 = vld [vmem:[%s418 + $0x78] sm:$0xff]
        %v937 = vld [vmem:[%s418 + $0x80] sm:$0xff]
        %v938 = vld [vmem:[%s418 + $0x88] sm:$0xff]
        %v939 = vld [vmem:[%s418 + $0x90] sm:$0xff]
        %v940 = vld [vmem:[%s418 + $0x98] sm:$0xff]
        %v941 = vld [vmem:[%s418 + $0xa0] sm:$0xff]
        %v942 = vld [vmem:[%s418 + $0xa8] sm:$0xff]
        %v943 = vld [vmem:[%s418 + $0xb0] sm:$0xff]
        %v944 = vld [vmem:[%s418 + $0xb8] sm:$0xff]
        %v945 = vld [vmem:[%s418 + $0xc0] sm:$0xff]
        %v946 = vld [vmem:[%s418 + $0xc8] sm:$0xff]
        %v947 = vld [vmem:[%s418 + $0xd0] sm:$0xff]
        %v948 = vld [vmem:[%s418 + $0xd8] sm:$0xff]
        %v949 = vld [vmem:[%s418 + $0xe0] sm:$0xff]
        %v950 = vld [vmem:[%s418 + $0xe8] sm:$0xff]
        %v951 = vld [vmem:[%s418 + $0xf0] sm:$0xff]
        %v952 = vld [vmem:[%s418 + $0xf8] sm:$0xff]
        %v953 = vld [vmem:[%s418 + $0x100] sm:$0xff]
        %v954 = vld [vmem:[%s418 + $0x108] sm:$0xff]
        %v955 = vld [vmem:[%s418 + $0x110] sm:$0xff]
        %v956 = vld [vmem:[%s418 + $0x118] sm:$0xff]
        %v957 = vld [vmem:[%s418 + $0x120] sm:$0xff]
        %v958 = vld [vmem:[%s418 + $0x128] sm:$0xff]
        %v959 = vld [vmem:[%s418 + $0x130] sm:$0xff]
        %v960 = vld [vmem:[%s418 + $0x138] sm:$0xff]
        %v961 = vld [vmem:[%s418 + $0x140] sm:$0xff]
        %v962 = vld [vmem:[%s418 + $0x148] sm:$0xff]
        %v963 = vld [vmem:[%s418 + $0x150] sm:$0xff]
        %v964 = vld [vmem:[%s418 + $0x158] sm:$0xff]
        %v965 = vld [vmem:[%s418 + $0x160] sm:$0xff]
        %v966 = vld [vmem:[%s418 + $0x168] sm:$0xff]
        %v967 = vld [vmem:[%s418 + $0x170] sm:$0xff]
        %v968 = vld [vmem:[%s418 + $0x178] sm:$0xff]
        %v969 = vld [vmem:[%s418 + $0x180] sm:$0xff]
        %v970 = vld [vmem:[%s418 + $0x188] sm:$0xff]
        %v971 = vld [vmem:[%s418 + $0x190] sm:$0xff]
        %v972 = vld [vmem:[%s418 + $0x198] sm:$0xff]
        %v973 = vld [vmem:[%s418 + $0x1a0] sm:$0xff]
        %v974 = vld [vmem:[%s418 + $0x1a8] sm:$0xff]
        %v975 = vld [vmem:[%s418 + $0x1b0] sm:$0xff]
        %v976 = vld [vmem:[%s418 + $0x1b8] sm:$0xff]
        %v977 = vld [vmem:[%s418 + $0x1c0] sm:$0xff]
        %v978 = vld [vmem:[%s418 + $0x1c8] sm:$0xff]
        %v979 = vld [vmem:[%s418 + $0x1d0] sm:$0xff]
        %v980 = vld [vmem:[%s418 + $0x1d8] sm:$0xff]
        %v981 = vld [vmem:[%s418 + $0x1e0] sm:$0xff]
        %v982 = vld [vmem:[%s418 + $0x1e8] sm:$0xff]
        %v983 = vld [vmem:[%s418 + $0x1f0] sm:$0xff]
        %v984 = vld [vmem:[%s418 + $0x1f8] sm:$0xff]
        %v985 = vmul.f32 %v536, %v921
        %v986 = vmul.f32 %v537, %v922
        %v987 = vmul.f32 %v538, %v923
        %v988 = vmul.f32 %v539, %v924
        %v989 = vmul.f32 %v540, %v925
        %v990 = vmul.f32 %v541, %v926
        %v991 = vmul.f32 %v542, %v927
        %v992 = vmul.f32 %v543, %v928
        %v993 = vmul.f32 %v544, %v929
        %v994 = vmul.f32 %v545, %v930
        %v995 = vmul.f32 %v546, %v931
        %v996 = vmul.f32 %v547, %v932
        %v997 = vmul.f32 %v548, %v933
        %v998 = vmul.f32 %v549, %v934
        %v999 = vmul.f32 %v550, %v935
        %v1000 = vmul.f32 %v551, %v936
        %v1001 = vmul.f32 %v552, %v937
        %v1002 = vmul.f32 %v553, %v938
        %v1003 = vmul.f32 %v554, %v939
        %v1004 = vmul.f32 %v555, %v940
        %v1005 = vmul.f32 %v556, %v941
        %v1006 = vmul.f32 %v557, %v942
        %v1007 = vmul.f32 %v558, %v943
        %v1008 = vmul.f32 %v559, %v944
        %v1009 = vmul.f32 %v560, %v945
        %v1010 = vmul.f32 %v561, %v946
        %v1011 = vmul.f32 %v562, %v947
        %v1012 = vmul.f32 %v563, %v948
        %v1013 = vmul.f32 %v564, %v949
        %v1014 = vmul.f32 %v565, %v950
        %v1015 = vmul.f32 %v566, %v951
        %v1016 = vmul.f32 %v567, %v952
        %v1017 = vmul.f32 %v568, %v953
        %v1018 = vmul.f32 %v569, %v954
        %v1019 = vmul.f32 %v570, %v955
        %v1020 = vmul.f32 %v571, %v956
        %v1021 = vmul.f32 %v572, %v957
        %v1022 = vmul.f32 %v573, %v958
        %v1023 = vmul.f32 %v574, %v959
        %v1024 = vmul.f32 %v575, %v960
        %v1025 = vmul.f32 %v576, %v961
        %v1026 = vmul.f32 %v577, %v962
        %v1027 = vmul.f32 %v578, %v963
        %v1028 = vmul.f32 %v579, %v964
        %v1029 = vmul.f32 %v580, %v965
        %v1030 = vmul.f32 %v581, %v966
        %v1031 = vmul.f32 %v582, %v967
        %v1032 = vmul.f32 %v583, %v968
        %v1033 = vmul.f32 %v584, %v969
        %v1034 = vmul.f32 %v585, %v970
        %v1035 = vmul.f32 %v586, %v971
        %v1036 = vmul.f32 %v587, %v972
        %v1037 = vmul.f32 %v588, %v973
        %v1038 = vmul.f32 %v589, %v974
        %v1039 = vmul.f32 %v590, %v975
        %v1040 = vmul.f32 %v591, %v976
        %v1041 = vmul.f32 %v592, %v977
        %v1042 = vmul.f32 %v593, %v978
        %v1043 = vmul.f32 %v594, %v979
        %v1044 = vmul.f32 %v595, %v980
        %v1045 = vmul.f32 %v596, %v981
        %v1046 = vmul.f32 %v597, %v982
        %v1047 = vmul.f32 %v598, %v983
        %v1048 = vmul.f32 %v599, %v984
        %1049 = vadd.xlane.f32.xlu0 %v985
        %v1050 = vpop.xlane.xlu0 %1049
        %1051 = vadd.xlane.f32.xlu0 %v986
        %v1052 = vpop.xlane.xlu0 %1051
        %1053 = vadd.xlane.f32.xlu0 %v987
        %v1054 = vpop.xlane.xlu0 %1053
        %1055 = vadd.xlane.f32.xlu0 %v988
        %v1056 = vpop.xlane.xlu0 %1055
        %1057 = vadd.xlane.f32.xlu0 %v989
        %v1058 = vpop.xlane.xlu0 %1057
        %1059 = vadd.xlane.f32.xlu0 %v990
        %v1060 = vpop.xlane.xlu0 %1059
        %1061 = vadd.xlane.f32.xlu0 %v991
        %v1062 = vpop.xlane.xlu0 %1061
        %1063 = vadd.xlane.f32.xlu0 %v992
        %v1064 = vpop.xlane.xlu0 %1063
        %1065 = vadd.xlane.f32.xlu0 %v993
        %v1066 = vpop.xlane.xlu0 %1065
        %1067 = vadd.xlane.f32.xlu0 %v994
        %v1068 = vpop.xlane.xlu0 %1067
        %1069 = vadd.xlane.f32.xlu0 %v995
        %v1070 = vpop.xlane.xlu0 %1069
        %1071 = vadd.xlane.f32.xlu0 %v996
        %v1072 = vpop.xlane.xlu0 %1071
        %1073 = vadd.xlane.f32.xlu0 %v997
        %v1074 = vpop.xlane.xlu0 %1073
        %1075 = vadd.xlane.f32.xlu0 %v998
        %v1076 = vpop.xlane.xlu0 %1075
        %1077 = vadd.xlane.f32.xlu0 %v999
        %v1078 = vpop.xlane.xlu0 %1077
        %1079 = vadd.xlane.f32.xlu0 %v1000
        %v1080 = vpop.xlane.xlu0 %1079
        %1081 = vadd.xlane.f32.xlu0 %v1001
        %v1082 = vpop.xlane.xlu0 %1081
        %1083 = vadd.xlane.f32.xlu0 %v1002
        %v1084 = vpop.xlane.xlu0 %1083
        %1085 = vadd.xlane.f32.xlu0 %v1003
        %v1086 = vpop.xlane.xlu0 %1085
        %1087 = vadd.xlane.f32.xlu0 %v1004
        %v1088 = vpop.xlane.xlu0 %1087
        %1089 = vadd.xlane.f32.xlu0 %v1005
        %v1090 = vpop.xlane.xlu0 %1089
        %1091 = vadd.xlane.f32.xlu0 %v1006
        %v1092 = vpop.xlane.xlu0 %1091
        %1093 = vadd.xlane.f32.xlu0 %v1007
        %v1094 = vpop.xlane.xlu0 %1093
        %1095 = vadd.xlane.f32.xlu0 %v1008
        %v1096 = vpop.xlane.xlu0 %1095
        %1097 = vadd.xlane.f32.xlu0 %v1009
        %v1098 = vpop.xlane.xlu0 %1097
        %1099 = vadd.xlane.f32.xlu0 %v1010
        %v1100 = vpop.xlane.xlu0 %1099
        %1101 = vadd.xlane.f32.xlu0 %v1011
        %v1102 = vpop.xlane.xlu0 %1101
        %1103 = vadd.xlane.f32.xlu0 %v1012
        %v1104 = vpop.xlane.xlu0 %1103
        %1105 = vadd.xlane.f32.xlu0 %v1013
        %v1106 = vpop.xlane.xlu0 %1105
        %1107 = vadd.xlane.f32.xlu0 %v1014
        %v1108 = vpop.xlane.xlu0 %1107
        %1109 = vadd.xlane.f32.xlu0 %v1015
        %v1110 = vpop.xlane.xlu0 %1109
        %1111 = vadd.xlane.f32.xlu0 %v1016
        %v1112 = vpop.xlane.xlu0 %1111
        %1113 = vadd.xlane.f32.xlu0 %v1017
        %v1114 = vpop.xlane.xlu0 %1113
        %1115 = vadd.xlane.f32.xlu0 %v1018
        %v1116 = vpop.xlane.xlu0 %1115
        %1117 = vadd.xlane.f32.xlu0 %v1019
        %v1118 = vpop.xlane.xlu0 %1117
        %1119 = vadd.xlane.f32.xlu0 %v1020
        %v1120 = vpop.xlane.xlu0 %1119
        %1121 = vadd.xlane.f32.xlu0 %v1021
        %v1122 = vpop.xlane.xlu0 %1121
        %1123 = vadd.xlane.f32.xlu0 %v1022
        %v1124 = vpop.xlane.xlu0 %1123
        %1125 = vadd.xlane.f32.xlu0 %v1023
        %v1126 = vpop.xlane.xlu0 %1125
        %1127 = vadd.xlane.f32.xlu0 %v1024
        %v1128 = vpop.xlane.xlu0 %1127
        %1129 = vadd.xlane.f32.xlu0 %v1025
        %v1130 = vpop.xlane.xlu0 %1129
        %1131 = vadd.xlane.f32.xlu0 %v1026
        %v1132 = vpop.xlane.xlu0 %1131
        %1133 = vadd.xlane.f32.xlu0 %v1027
        %v1134 = vpop.xlane.xlu0 %1133
        %1135 = vadd.xlane.f32.xlu0 %v1028
        %v1136 = vpop.xlane.xlu0 %1135
        %1137 = vadd.xlane.f32.xlu0 %v1029
        %v1138 = vpop.xlane.xlu0 %1137
        %1139 = vadd.xlane.f32.xlu0 %v1030
        %v1140 = vpop.xlane.xlu0 %1139
        %1141 = vadd.xlane.f32.xlu0 %v1031
        %v1142 = vpop.xlane.xlu0 %1141
        %1143 = vadd.xlane.f32.xlu0 %v1032
        %v1144 = vpop.xlane.xlu0 %1143
        %1145 = vadd.xlane.f32.xlu0 %v1033
        %v1146 = vpop.xlane.xlu0 %1145
        %1147 = vadd.xlane.f32.xlu0 %v1034
        %v1148 = vpop.xlane.xlu0 %1147
        %1149 = vadd.xlane.f32.xlu0 %v1035
        %v1150 = vpop.xlane.xlu0 %1149
        %1151 = vadd.xlane.f32.xlu0 %v1036
        %v1152 = vpop.xlane.xlu0 %1151
        %1153 = vadd.xlane.f32.xlu0 %v1037
        %v1154 = vpop.xlane.xlu0 %1153
        %1155 = vadd.xlane.f32.xlu0 %v1038
        %v1156 = vpop.xlane.xlu0 %1155
        %1157 = vadd.xlane.f32.xlu0 %v1039
        %v1158 = vpop.xlane.xlu0 %1157
        %1159 = vadd.xlane.f32.xlu0 %v1040
        %v1160 = vpop.xlane.xlu0 %1159
        %1161 = vadd.xlane.f32.xlu0 %v1041
        %v1162 = vpop.xlane.xlu0 %1161
        %1163 = vadd.xlane.f32.xlu0 %v1042
        %v1164 = vpop.xlane.xlu0 %1163
        %1165 = vadd.xlane.f32.xlu0 %v1043
        %v1166 = vpop.xlane.xlu0 %1165
        %1167 = vadd.xlane.f32.xlu0 %v1044
        %v1168 = vpop.xlane.xlu0 %1167
        %1169 = vadd.xlane.f32.xlu0 %v1045
        %v1170 = vpop.xlane.xlu0 %1169
        %1171 = vadd.xlane.f32.xlu0 %v1046
        %v1172 = vpop.xlane.xlu0 %1171
        %1173 = vadd.xlane.f32.xlu0 %v1047
        %v1174 = vpop.xlane.xlu0 %1173
        %1175 = vadd.xlane.f32.xlu0 %v1048
        %v1176 = vpop.xlane.xlu0 %1175
        %1177 = vst.msk [vmem:[%s522] sm:$0xff] %vm856, %v1050
        %1178 = vst.msk [vmem:[%s522 + $0x8] sm:$0xff] %vm856, %v1052
        %1179 = vst.msk [vmem:[%s522 + $0x10] sm:$0xff] %vm856, %v1054
        %1180 = vst.msk [vmem:[%s522 + $0x18] sm:$0xff] %vm856, %v1056
        %1181 = vst.msk [vmem:[%s522 + $0x20] sm:$0xff] %vm856, %v1058
        %1182 = vst.msk [vmem:[%s522 + $0x28] sm:$0xff] %vm856, %v1060
        %1183 = vst.msk [vmem:[%s522 + $0x30] sm:$0xff] %vm856, %v1062
        %1184 = vst.msk [vmem:[%s522 + $0x38] sm:$0xff] %vm856, %v1064
        %1185 = vst.msk [vmem:[%s522 + $0x40] sm:$0xff] %vm856, %v1066
        %1186 = vst.msk [vmem:[%s522 + $0x48] sm:$0xff] %vm856, %v1068
        %1187 = vst.msk [vmem:[%s522 + $0x50] sm:$0xff] %vm856, %v1070
        %1188 = vst.msk [vmem:[%s522 + $0x58] sm:$0xff] %vm856, %v1072
        %1189 = vst.msk [vmem:[%s522 + $0x60] sm:$0xff] %vm856, %v1074
        %1190 = vst.msk [vmem:[%s522 + $0x68] sm:$0xff] %vm856, %v1076
        %1191 = vst.msk [vmem:[%s522 + $0x70] sm:$0xff] %vm856, %v1078
        %1192 = vst.msk [vmem:[%s522 + $0x78] sm:$0xff] %vm856, %v1080
        %1193 = vst.msk [vmem:[%s522 + $0x80] sm:$0xff] %vm856, %v1082
        %1194 = vst.msk [vmem:[%s522 + $0x88] sm:$0xff] %vm856, %v1084
        %1195 = vst.msk [vmem:[%s522 + $0x90] sm:$0xff] %vm856, %v1086
        %1196 = vst.msk [vmem:[%s522 + $0x98] sm:$0xff] %vm856, %v1088
        %1197 = vst.msk [vmem:[%s522 + $0xa0] sm:$0xff] %vm856, %v1090
        %1198 = vst.msk [vmem:[%s522 + $0xa8] sm:$0xff] %vm856, %v1092
        %1199 = vst.msk [vmem:[%s522 + $0xb0] sm:$0xff] %vm856, %v1094
        %1200 = vst.msk [vmem:[%s522 + $0xb8] sm:$0xff] %vm856, %v1096
        %1201 = vst.msk [vmem:[%s522 + $0xc0] sm:$0xff] %vm856, %v1098
        %1202 = vst.msk [vmem:[%s522 + $0xc8] sm:$0xff] %vm856, %v1100
        %1203 = vst.msk [vmem:[%s522 + $0xd0] sm:$0xff] %vm856, %v1102
        %1204 = vst.msk [vmem:[%s522 + $0xd8] sm:$0xff] %vm856, %v1104
        %1205 = vst.msk [vmem:[%s522 + $0xe0] sm:$0xff] %vm856, %v1106
        %1206 = vst.msk [vmem:[%s522 + $0xe8] sm:$0xff] %vm856, %v1108
        %1207 = vst.msk [vmem:[%s522 + $0xf0] sm:$0xff] %vm856, %v1110
        %1208 = vst.msk [vmem:[%s522 + $0xf8] sm:$0xff] %vm856, %v1112
        %1209 = vst.msk [vmem:[%s522 + $0x100] sm:$0xff] %vm856, %v1114
        %1210 = vst.msk [vmem:[%s522 + $0x108] sm:$0xff] %vm856, %v1116
        %1211 = vst.msk [vmem:[%s522 + $0x110] sm:$0xff] %vm856, %v1118
        %1212 = vst.msk [vmem:[%s522 + $0x118] sm:$0xff] %vm856, %v1120
        %1213 = vst.msk [vmem:[%s522 + $0x120] sm:$0xff] %vm856, %v1122
        %1214 = vst.msk [vmem:[%s522 + $0x128] sm:$0xff] %vm856, %v1124
        %1215 = vst.msk [vmem:[%s522 + $0x130] sm:$0xff] %vm856, %v1126
        %1216 = vst.msk [vmem:[%s522 + $0x138] sm:$0xff] %vm856, %v1128
        %1217 = vst.msk [vmem:[%s522 + $0x140] sm:$0xff] %vm856, %v1130
        %1218 = vst.msk [vmem:[%s522 + $0x148] sm:$0xff] %vm856, %v1132
        %1219 = vst.msk [vmem:[%s522 + $0x150] sm:$0xff] %vm856, %v1134
        %1220 = vst.msk [vmem:[%s522 + $0x158] sm:$0xff] %vm856, %v1136
        %1221 = vst.msk [vmem:[%s522 + $0x160] sm:$0xff] %vm856, %v1138
        %1222 = vst.msk [vmem:[%s522 + $0x168] sm:$0xff] %vm856, %v1140
        %1223 = vst.msk [vmem:[%s522 + $0x170] sm:$0xff] %vm856, %v1142
        %1224 = vst.msk [vmem:[%s522 + $0x178] sm:$0xff] %vm856, %v1144
        %1225 = vst.msk [vmem:[%s522 + $0x180] sm:$0xff] %vm856, %v1146
        %1226 = vst.msk [vmem:[%s522 + $0x188] sm:$0xff] %vm856, %v1148
        %1227 = vst.msk [vmem:[%s522 + $0x190] sm:$0xff] %vm856, %v1150
        %1228 = vst.msk [vmem:[%s522 + $0x198] sm:$0xff] %vm856, %v1152
        %1229 = vst.msk [vmem:[%s522 + $0x1a0] sm:$0xff] %vm856, %v1154
        %1230 = vst.msk [vmem:[%s522 + $0x1a8] sm:$0xff] %vm856, %v1156
        %1231 = vst.msk [vmem:[%s522 + $0x1b0] sm:$0xff] %vm856, %v1158
        %1232 = vst.msk [vmem:[%s522 + $0x1b8] sm:$0xff] %vm856, %v1160
        %1233 = vst.msk [vmem:[%s522 + $0x1c0] sm:$0xff] %vm856, %v1162
        %1234 = vst.msk [vmem:[%s522 + $0x1c8] sm:$0xff] %vm856, %v1164
        %1235 = vst.msk [vmem:[%s522 + $0x1d0] sm:$0xff] %vm856, %v1166
        %1236 = vst.msk [vmem:[%s522 + $0x1d8] sm:$0xff] %vm856, %v1168
        %1237 = vst.msk [vmem:[%s522 + $0x1e0] sm:$0xff] %vm856, %v1170
        %1238 = vst.msk [vmem:[%s522 + $0x1e8] sm:$0xff] %vm856, %v1172
        %1239 = vst.msk [vmem:[%s522 + $0x1f0] sm:$0xff] %vm856, %v1174
        %1240 = vst.msk [vmem:[%s522 + $0x1f8] sm:$0xff] %vm856, %v1176
        %v1241 = vld [vmem:[%s428] sm:$0xff]
        %v1242 = vld [vmem:[%s428 + $0x8] sm:$0xff]
        %v1243 = vld [vmem:[%s428 + $0x10] sm:$0xff]
        %v1244 = vld [vmem:[%s428 + $0x18] sm:$0xff]
        %v1245 = vld [vmem:[%s428 + $0x20] sm:$0xff]
        %v1246 = vld [vmem:[%s428 + $0x28] sm:$0xff]
        %v1247 = vld [vmem:[%s428 + $0x30] sm:$0xff]
        %v1248 = vld [vmem:[%s428 + $0x38] sm:$0xff]
        %v1249 = vld [vmem:[%s428 + $0x40] sm:$0xff]
        %v1250 = vld [vmem:[%s428 + $0x48] sm:$0xff]
        %v1251 = vld [vmem:[%s428 + $0x50] sm:$0xff]
        %v1252 = vld [vmem:[%s428 + $0x58] sm:$0xff]
        %v1253 = vld [vmem:[%s428 + $0x60] sm:$0xff]
        %v1254 = vld [vmem:[%s428 + $0x68] sm:$0xff]
        %v1255 = vld [vmem:[%s428 + $0x70] sm:$0xff]
        %v1256 = vld [vmem:[%s428 + $0x78] sm:$0xff]
        %v1257 = vld [vmem:[%s428 + $0x80] sm:$0xff]
        %v1258 = vld [vmem:[%s428 + $0x88] sm:$0xff]
        %v1259 = vld [vmem:[%s428 + $0x90] sm:$0xff]
        %v1260 = vld [vmem:[%s428 + $0x98] sm:$0xff]
        %v1261 = vld [vmem:[%s428 + $0xa0] sm:$0xff]
        %v1262 = vld [vmem:[%s428 + $0xa8] sm:$0xff]
        %v1263 = vld [vmem:[%s428 + $0xb0] sm:$0xff]
        %v1264 = vld [vmem:[%s428 + $0xb8] sm:$0xff]
        %v1265 = vld [vmem:[%s428 + $0xc0] sm:$0xff]
        %v1266 = vld [vmem:[%s428 + $0xc8] sm:$0xff]
        %v1267 = vld [vmem:[%s428 + $0xd0] sm:$0xff]
        %v1268 = vld [vmem:[%s428 + $0xd8] sm:$0xff]
        %v1269 = vld [vmem:[%s428 + $0xe0] sm:$0xff]
        %v1270 = vld [vmem:[%s428 + $0xe8] sm:$0xff]
        %v1271 = vld [vmem:[%s428 + $0xf0] sm:$0xff]
        %v1272 = vld [vmem:[%s428 + $0xf8] sm:$0xff]
        %v1273 = vld [vmem:[%s428 + $0x100] sm:$0xff]
        %v1274 = vld [vmem:[%s428 + $0x108] sm:$0xff]
        %v1275 = vld [vmem:[%s428 + $0x110] sm:$0xff]
        %v1276 = vld [vmem:[%s428 + $0x118] sm:$0xff]
        %v1277 = vld [vmem:[%s428 + $0x120] sm:$0xff]
        %v1278 = vld [vmem:[%s428 + $0x128] sm:$0xff]
        %v1279 = vld [vmem:[%s428 + $0x130] sm:$0xff]
        %v1280 = vld [vmem:[%s428 + $0x138] sm:$0xff]
        %v1281 = vld [vmem:[%s428 + $0x140] sm:$0xff]
        %v1282 = vld [vmem:[%s428 + $0x148] sm:$0xff]
        %v1283 = vld [vmem:[%s428 + $0x150] sm:$0xff]
        %v1284 = vld [vmem:[%s428 + $0x158] sm:$0xff]
        %v1285 = vld [vmem:[%s428 + $0x160] sm:$0xff]
        %v1286 = vld [vmem:[%s428 + $0x168] sm:$0xff]
        %v1287 = vld [vmem:[%s428 + $0x170] sm:$0xff]
        %v1288 = vld [vmem:[%s428 + $0x178] sm:$0xff]
        %v1289 = vld [vmem:[%s428 + $0x180] sm:$0xff]
        %v1290 = vld [vmem:[%s428 + $0x188] sm:$0xff]
        %v1291 = vld [vmem:[%s428 + $0x190] sm:$0xff]
        %v1292 = vld [vmem:[%s428 + $0x198] sm:$0xff]
        %v1293 = vld [vmem:[%s428 + $0x1a0] sm:$0xff]
        %v1294 = vld [vmem:[%s428 + $0x1a8] sm:$0xff]
        %v1295 = vld [vmem:[%s428 + $0x1b0] sm:$0xff]
        %v1296 = vld [vmem:[%s428 + $0x1b8] sm:$0xff]
        %v1297 = vld [vmem:[%s428 + $0x1c0] sm:$0xff]
        %v1298 = vld [vmem:[%s428 + $0x1c8] sm:$0xff]
        %v1299 = vld [vmem:[%s428 + $0x1d0] sm:$0xff]
        %v1300 = vld [vmem:[%s428 + $0x1d8] sm:$0xff]
        %v1301 = vld [vmem:[%s428 + $0x1e0] sm:$0xff]
        %v1302 = vld [vmem:[%s428 + $0x1e8] sm:$0xff]
        %v1303 = vld [vmem:[%s428 + $0x1f0] sm:$0xff]
        %v1304 = vld [vmem:[%s428 + $0x1f8] sm:$0xff]
        %v1305 = vmul.f32 %v536, %v1241
        %v1306 = vmul.f32 %v537, %v1242
        %v1307 = vmul.f32 %v538, %v1243
        %v1308 = vmul.f32 %v539, %v1244
        %v1309 = vmul.f32 %v540, %v1245
        %v1310 = vmul.f32 %v541, %v1246
        %v1311 = vmul.f32 %v542, %v1247
        %v1312 = vmul.f32 %v543, %v1248
        %v1313 = vmul.f32 %v544, %v1249
        %v1314 = vmul.f32 %v545, %v1250
        %v1315 = vmul.f32 %v546, %v1251
        %v1316 = vmul.f32 %v547, %v1252
        %v1317 = vmul.f32 %v548, %v1253
        %v1318 = vmul.f32 %v549, %v1254
        %v1319 = vmul.f32 %v550, %v1255
        %v1320 = vmul.f32 %v551, %v1256
        %v1321 = vmul.f32 %v552, %v1257
        %v1322 = vmul.f32 %v553, %v1258
        %v1323 = vmul.f32 %v554, %v1259
        %v1324 = vmul.f32 %v555, %v1260
        %v1325 = vmul.f32 %v556, %v1261
        %v1326 = vmul.f32 %v557, %v1262
        %v1327 = vmul.f32 %v558, %v1263
        %v1328 = vmul.f32 %v559, %v1264
        %v1329 = vmul.f32 %v560, %v1265
        %v1330 = vmul.f32 %v561, %v1266
        %v1331 = vmul.f32 %v562, %v1267
        %v1332 = vmul.f32 %v563, %v1268
        %v1333 = vmul.f32 %v564, %v1269
        %v1334 = vmul.f32 %v565, %v1270
        %v1335 = vmul.f32 %v566, %v1271
        %v1336 = vmul.f32 %v567, %v1272
        %v1337 = vmul.f32 %v568, %v1273
        %v1338 = vmul.f32 %v569, %v1274
        %v1339 = vmul.f32 %v570, %v1275
        %v1340 = vmul.f32 %v571, %v1276
        %v1341 = vmul.f32 %v572, %v1277
        %v1342 = vmul.f32 %v573, %v1278
        %v1343 = vmul.f32 %v574, %v1279
        %v1344 = vmul.f32 %v575, %v1280
        %v1345 = vmul.f32 %v576, %v1281
        %v1346 = vmul.f32 %v577, %v1282
        %v1347 = vmul.f32 %v578, %v1283
        %v1348 = vmul.f32 %v579, %v1284
        %v1349 = vmul.f32 %v580, %v1285
        %v1350 = vmul.f32 %v581, %v1286
        %v1351 = vmul.f32 %v582, %v1287
        %v1352 = vmul.f32 %v583, %v1288
        %v1353 = vmul.f32 %v584, %v1289
        %v1354 = vmul.f32 %v585, %v1290
        %v1355 = vmul.f32 %v586, %v1291
        %v1356 = vmul.f32 %v587, %v1292
        %v1357 = vmul.f32 %v588, %v1293
        %v1358 = vmul.f32 %v589, %v1294
        %v1359 = vmul.f32 %v590, %v1295
        %v1360 = vmul.f32 %v591, %v1296
        %v1361 = vmul.f32 %v592, %v1297
        %v1362 = vmul.f32 %v593, %v1298
        %v1363 = vmul.f32 %v594, %v1299
        %v1364 = vmul.f32 %v595, %v1300
        %v1365 = vmul.f32 %v596, %v1301
        %v1366 = vmul.f32 %v597, %v1302
        %v1367 = vmul.f32 %v598, %v1303
        %v1368 = vmul.f32 %v599, %v1304
        %1369 = vadd.xlane.f32.xlu0 %v1305
        %v1370 = vpop.xlane.xlu0 %1369
        %1371 = vadd.xlane.f32.xlu0 %v1306
        %v1372 = vpop.xlane.xlu0 %1371
        %1373 = vadd.xlane.f32.xlu0 %v1307
        %v1374 = vpop.xlane.xlu0 %1373
        %1375 = vadd.xlane.f32.xlu0 %v1308
        %v1376 = vpop.xlane.xlu0 %1375
        %1377 = vadd.xlane.f32.xlu0 %v1309
        %v1378 = vpop.xlane.xlu0 %1377
        %1379 = vadd.xlane.f32.xlu0 %v1310
        %v1380 = vpop.xlane.xlu0 %1379
        %1381 = vadd.xlane.f32.xlu0 %v1311
        %v1382 = vpop.xlane.xlu0 %1381
        %1383 = vadd.xlane.f32.xlu0 %v1312
        %v1384 = vpop.xlane.xlu0 %1383
        %1385 = vadd.xlane.f32.xlu0 %v1313
        %v1386 = vpop.xlane.xlu0 %1385
        %1387 = vadd.xlane.f32.xlu0 %v1314
        %v1388 = vpop.xlane.xlu0 %1387
        %1389 = vadd.xlane.f32.xlu0 %v1315
        %v1390 = vpop.xlane.xlu0 %1389
        %1391 = vadd.xlane.f32.xlu0 %v1316
        %v1392 = vpop.xlane.xlu0 %1391
        %1393 = vadd.xlane.f32.xlu0 %v1317
        %v1394 = vpop.xlane.xlu0 %1393
        %1395 = vadd.xlane.f32.xlu0 %v1318
        %v1396 = vpop.xlane.xlu0 %1395
        %1397 = vadd.xlane.f32.xlu0 %v1319
        %v1398 = vpop.xlane.xlu0 %1397
        %1399 = vadd.xlane.f32.xlu0 %v1320
        %v1400 = vpop.xlane.xlu0 %1399
        %1401 = vadd.xlane.f32.xlu0 %v1321
        %v1402 = vpop.xlane.xlu0 %1401
        %1403 = vadd.xlane.f32.xlu0 %v1322
        %v1404 = vpop.xlane.xlu0 %1403
        %1405 = vadd.xlane.f32.xlu0 %v1323
        %v1406 = vpop.xlane.xlu0 %1405
        %1407 = vadd.xlane.f32.xlu0 %v1324
        %v1408 = vpop.xlane.xlu0 %1407
        %1409 = vadd.xlane.f32.xlu0 %v1325
        %v1410 = vpop.xlane.xlu0 %1409
        %1411 = vadd.xlane.f32.xlu0 %v1326
        %v1412 = vpop.xlane.xlu0 %1411
        %1413 = vadd.xlane.f32.xlu0 %v1327
        %v1414 = vpop.xlane.xlu0 %1413
        %1415 = vadd.xlane.f32.xlu0 %v1328
        %v1416 = vpop.xlane.xlu0 %1415
        %1417 = vadd.xlane.f32.xlu0 %v1329
        %v1418 = vpop.xlane.xlu0 %1417
        %1419 = vadd.xlane.f32.xlu0 %v1330
        %v1420 = vpop.xlane.xlu0 %1419
        %1421 = vadd.xlane.f32.xlu0 %v1331
        %v1422 = vpop.xlane.xlu0 %1421
        %1423 = vadd.xlane.f32.xlu0 %v1332
        %v1424 = vpop.xlane.xlu0 %1423
        %1425 = vadd.xlane.f32.xlu0 %v1333
        %v1426 = vpop.xlane.xlu0 %1425
        %1427 = vadd.xlane.f32.xlu0 %v1334
        %v1428 = vpop.xlane.xlu0 %1427
        %1429 = vadd.xlane.f32.xlu0 %v1335
        %v1430 = vpop.xlane.xlu0 %1429
        %1431 = vadd.xlane.f32.xlu0 %v1336
        %v1432 = vpop.xlane.xlu0 %1431
        %1433 = vadd.xlane.f32.xlu0 %v1337
        %v1434 = vpop.xlane.xlu0 %1433
        %1435 = vadd.xlane.f32.xlu0 %v1338
        %v1436 = vpop.xlane.xlu0 %1435
        %1437 = vadd.xlane.f32.xlu0 %v1339
        %v1438 = vpop.xlane.xlu0 %1437
        %1439 = vadd.xlane.f32.xlu0 %v1340
        %v1440 = vpop.xlane.xlu0 %1439
        %1441 = vadd.xlane.f32.xlu0 %v1341
        %v1442 = vpop.xlane.xlu0 %1441
        %1443 = vadd.xlane.f32.xlu0 %v1342
        %v1444 = vpop.xlane.xlu0 %1443
        %1445 = vadd.xlane.f32.xlu0 %v1343
        %v1446 = vpop.xlane.xlu0 %1445
        %1447 = vadd.xlane.f32.xlu0 %v1344
        %v1448 = vpop.xlane.xlu0 %1447
        %1449 = vadd.xlane.f32.xlu0 %v1345
        %v1450 = vpop.xlane.xlu0 %1449
        %1451 = vadd.xlane.f32.xlu0 %v1346
        %v1452 = vpop.xlane.xlu0 %1451
        %1453 = vadd.xlane.f32.xlu0 %v1347
        %v1454 = vpop.xlane.xlu0 %1453
        %1455 = vadd.xlane.f32.xlu0 %v1348
        %v1456 = vpop.xlane.xlu0 %1455
        %1457 = vadd.xlane.f32.xlu0 %v1349
        %v1458 = vpop.xlane.xlu0 %1457
        %1459 = vadd.xlane.f32.xlu0 %v1350
        %v1460 = vpop.xlane.xlu0 %1459
        %1461 = vadd.xlane.f32.xlu0 %v1351
        %v1462 = vpop.xlane.xlu0 %1461
        %1463 = vadd.xlane.f32.xlu0 %v1352
        %v1464 = vpop.xlane.xlu0 %1463
        %1465 = vadd.xlane.f32.xlu0 %v1353
        %v1466 = vpop.xlane.xlu0 %1465
        %1467 = vadd.xlane.f32.xlu0 %v1354
        %v1468 = vpop.xlane.xlu0 %1467
        %1469 = vadd.xlane.f32.xlu0 %v1355
        %v1470 = vpop.xlane.xlu0 %1469
        %1471 = vadd.xlane.f32.xlu0 %v1356
        %v1472 = vpop.xlane.xlu0 %1471
        %1473 = vadd.xlane.f32.xlu0 %v1357
        %v1474 = vpop.xlane.xlu0 %1473
        %1475 = vadd.xlane.f32.xlu0 %v1358
        %v1476 = vpop.xlane.xlu0 %1475
        %1477 = vadd.xlane.f32.xlu0 %v1359
        %v1478 = vpop.xlane.xlu0 %1477
        %1479 = vadd.xlane.f32.xlu0 %v1360
        %v1480 = vpop.xlane.xlu0 %1479
        %1481 = vadd.xlane.f32.xlu0 %v1361
        %v1482 = vpop.xlane.xlu0 %1481
        %1483 = vadd.xlane.f32.xlu0 %v1362
        %v1484 = vpop.xlane.xlu0 %1483
        %1485 = vadd.xlane.f32.xlu0 %v1363
        %v1486 = vpop.xlane.xlu0 %1485
        %1487 = vadd.xlane.f32.xlu0 %v1364
        %v1488 = vpop.xlane.xlu0 %1487
        %1489 = vadd.xlane.f32.xlu0 %v1365
        %v1490 = vpop.xlane.xlu0 %1489
        %1491 = vadd.xlane.f32.xlu0 %v1366
        %v1492 = vpop.xlane.xlu0 %1491
        %1493 = vadd.xlane.f32.xlu0 %v1367
        %v1494 = vpop.xlane.xlu0 %1493
        %1495 = vadd.xlane.f32.xlu0 %v1368
        %v1496 = vpop.xlane.xlu0 %1495
        %1497 = vst.msk [vmem:[%s528] sm:$0xff] %vm856, %v1370
        %1498 = vst.msk [vmem:[%s528 + $0x8] sm:$0xff] %vm856, %v1372
        %1499 = vst.msk [vmem:[%s528 + $0x10] sm:$0xff] %vm856, %v1374
        %1500 = vst.msk [vmem:[%s528 + $0x18] sm:$0xff] %vm856, %v1376
        %1501 = vst.msk [vmem:[%s528 + $0x20] sm:$0xff] %vm856, %v1378
        %1502 = vst.msk [vmem:[%s528 + $0x28] sm:$0xff] %vm856, %v1380
        %1503 = vst.msk [vmem:[%s528 + $0x30] sm:$0xff] %vm856, %v1382
        %1504 = vst.msk [vmem:[%s528 + $0x38] sm:$0xff] %vm856, %v1384
        %1505 = vst.msk [vmem:[%s528 + $0x40] sm:$0xff] %vm856, %v1386
        %1506 = vst.msk [vmem:[%s528 + $0x48] sm:$0xff] %vm856, %v1388
        %1507 = vst.msk [vmem:[%s528 + $0x50] sm:$0xff] %vm856, %v1390
        %1508 = vst.msk [vmem:[%s528 + $0x58] sm:$0xff] %vm856, %v1392
        %1509 = vst.msk [vmem:[%s528 + $0x60] sm:$0xff] %vm856, %v1394
        %1510 = vst.msk [vmem:[%s528 + $0x68] sm:$0xff] %vm856, %v1396
        %1511 = vst.msk [vmem:[%s528 + $0x70] sm:$0xff] %vm856, %v1398
        %1512 = vst.msk [vmem:[%s528 + $0x78] sm:$0xff] %vm856, %v1400
        %1513 = vst.msk [vmem:[%s528 + $0x80] sm:$0xff] %vm856, %v1402
        %1514 = vst.msk [vmem:[%s528 + $0x88] sm:$0xff] %vm856, %v1404
        %1515 = vst.msk [vmem:[%s528 + $0x90] sm:$0xff] %vm856, %v1406
        %1516 = vst.msk [vmem:[%s528 + $0x98] sm:$0xff] %vm856, %v1408
        %1517 = vst.msk [vmem:[%s528 + $0xa0] sm:$0xff] %vm856, %v1410
        %1518 = vst.msk [vmem:[%s528 + $0xa8] sm:$0xff] %vm856, %v1412
        %1519 = vst.msk [vmem:[%s528 + $0xb0] sm:$0xff] %vm856, %v1414
        %1520 = vst.msk [vmem:[%s528 + $0xb8] sm:$0xff] %vm856, %v1416
        %1521 = vst.msk [vmem:[%s528 + $0xc0] sm:$0xff] %vm856, %v1418
        %1522 = vst.msk [vmem:[%s528 + $0xc8] sm:$0xff] %vm856, %v1420
        %1523 = vst.msk [vmem:[%s528 + $0xd0] sm:$0xff] %vm856, %v1422
        %1524 = vst.msk [vmem:[%s528 + $0xd8] sm:$0xff] %vm856, %v1424
        %1525 = vst.msk [vmem:[%s528 + $0xe0] sm:$0xff] %vm856, %v1426
        %1526 = vst.msk [vmem:[%s528 + $0xe8] sm:$0xff] %vm856, %v1428
        %1527 = vst.msk [vmem:[%s528 + $0xf0] sm:$0xff] %vm856, %v1430
        %1528 = vst.msk [vmem:[%s528 + $0xf8] sm:$0xff] %vm856, %v1432
        %1529 = vst.msk [vmem:[%s528 + $0x100] sm:$0xff] %vm856, %v1434
        %1530 = vst.msk [vmem:[%s528 + $0x108] sm:$0xff] %vm856, %v1436
        %1531 = vst.msk [vmem:[%s528 + $0x110] sm:$0xff] %vm856, %v1438
        %1532 = vst.msk [vmem:[%s528 + $0x118] sm:$0xff] %vm856, %v1440
        %1533 = vst.msk [vmem:[%s528 + $0x120] sm:$0xff] %vm856, %v1442
        %1534 = vst.msk [vmem:[%s528 + $0x128] sm:$0xff] %vm856, %v1444
        %1535 = vst.msk [vmem:[%s528 + $0x130] sm:$0xff] %vm856, %v1446
        %1536 = vst.msk [vmem:[%s528 + $0x138] sm:$0xff] %vm856, %v1448
        %1537 = vst.msk [vmem:[%s528 + $0x140] sm:$0xff] %vm856, %v1450
        %1538 = vst.msk [vmem:[%s528 + $0x148] sm:$0xff] %vm856, %v1452
        %1539 = vst.msk [vmem:[%s528 + $0x150] sm:$0xff] %vm856, %v1454
        %1540 = vst.msk [vmem:[%s528 + $0x158] sm:$0xff] %vm856, %v1456
        %1541 = vst.msk [vmem:[%s528 + $0x160] sm:$0xff] %vm856, %v1458
        %1542 = vst.msk [vmem:[%s528 + $0x168] sm:$0xff] %vm856, %v1460
        %1543 = vst.msk [vmem:[%s528 + $0x170] sm:$0xff] %vm856, %v1462
        %1544 = vst.msk [vmem:[%s528 + $0x178] sm:$0xff] %vm856, %v1464
        %1545 = vst.msk [vmem:[%s528 + $0x180] sm:$0xff] %vm856, %v1466
        %1546 = vst.msk [vmem:[%s528 + $0x188] sm:$0xff] %vm856, %v1468
        %1547 = vst.msk [vmem:[%s528 + $0x190] sm:$0xff] %vm856, %v1470
        %1548 = vst.msk [vmem:[%s528 + $0x198] sm:$0xff] %vm856, %v1472
        %1549 = vst.msk [vmem:[%s528 + $0x1a0] sm:$0xff] %vm856, %v1474
        %1550 = vst.msk [vmem:[%s528 + $0x1a8] sm:$0xff] %vm856, %v1476
        %1551 = vst.msk [vmem:[%s528 + $0x1b0] sm:$0xff] %vm856, %v1478
        %1552 = vst.msk [vmem:[%s528 + $0x1b8] sm:$0xff] %vm856, %v1480
        %1553 = vst.msk [vmem:[%s528 + $0x1c0] sm:$0xff] %vm856, %v1482
        %1554 = vst.msk [vmem:[%s528 + $0x1c8] sm:$0xff] %vm856, %v1484
        %1555 = vst.msk [vmem:[%s528 + $0x1d0] sm:$0xff] %vm856, %v1486
        %1556 = vst.msk [vmem:[%s528 + $0x1d8] sm:$0xff] %vm856, %v1488
        %1557 = vst.msk [vmem:[%s528 + $0x1e0] sm:$0xff] %vm856, %v1490
        %1558 = vst.msk [vmem:[%s528 + $0x1e8] sm:$0xff] %vm856, %v1492
        %1559 = vst.msk [vmem:[%s528 + $0x1f0] sm:$0xff] %vm856, %v1494
        %1560 = vst.msk [vmem:[%s528 + $0x1f8] sm:$0xff] %vm856, %v1496
        %v1561 = vld [vmem:[%s438] sm:$0xff]
        %v1562 = vld [vmem:[%s438 + $0x8] sm:$0xff]
        %v1563 = vld [vmem:[%s438 + $0x10] sm:$0xff]
        %v1564 = vld [vmem:[%s438 + $0x18] sm:$0xff]
        %v1565 = vld [vmem:[%s438 + $0x20] sm:$0xff]
        %v1566 = vld [vmem:[%s438 + $0x28] sm:$0xff]
        %v1567 = vld [vmem:[%s438 + $0x30] sm:$0xff]
        %v1568 = vld [vmem:[%s438 + $0x38] sm:$0xff]
        %v1569 = vld [vmem:[%s438 + $0x40] sm:$0xff]
        %v1570 = vld [vmem:[%s438 + $0x48] sm:$0xff]
        %v1571 = vld [vmem:[%s438 + $0x50] sm:$0xff]
        %v1572 = vld [vmem:[%s438 + $0x58] sm:$0xff]
        %v1573 = vld [vmem:[%s438 + $0x60] sm:$0xff]
        %v1574 = vld [vmem:[%s438 + $0x68] sm:$0xff]
        %v1575 = vld [vmem:[%s438 + $0x70] sm:$0xff]
        %v1576 = vld [vmem:[%s438 + $0x78] sm:$0xff]
        %v1577 = vld [vmem:[%s438 + $0x80] sm:$0xff]
        %v1578 = vld [vmem:[%s438 + $0x88] sm:$0xff]
        %v1579 = vld [vmem:[%s438 + $0x90] sm:$0xff]
        %v1580 = vld [vmem:[%s438 + $0x98] sm:$0xff]
        %v1581 = vld [vmem:[%s438 + $0xa0] sm:$0xff]
        %v1582 = vld [vmem:[%s438 + $0xa8] sm:$0xff]
        %v1583 = vld [vmem:[%s438 + $0xb0] sm:$0xff]
        %v1584 = vld [vmem:[%s438 + $0xb8] sm:$0xff]
        %v1585 = vld [vmem:[%s438 + $0xc0] sm:$0xff]
        %v1586 = vld [vmem:[%s438 + $0xc8] sm:$0xff]
        %v1587 = vld [vmem:[%s438 + $0xd0] sm:$0xff]
        %v1588 = vld [vmem:[%s438 + $0xd8] sm:$0xff]
        %v1589 = vld [vmem:[%s438 + $0xe0] sm:$0xff]
        %v1590 = vld [vmem:[%s438 + $0xe8] sm:$0xff]
        %v1591 = vld [vmem:[%s438 + $0xf0] sm:$0xff]
        %v1592 = vld [vmem:[%s438 + $0xf8] sm:$0xff]
        %v1593 = vld [vmem:[%s438 + $0x100] sm:$0xff]
        %v1594 = vld [vmem:[%s438 + $0x108] sm:$0xff]
        %v1595 = vld [vmem:[%s438 + $0x110] sm:$0xff]
        %v1596 = vld [vmem:[%s438 + $0x118] sm:$0xff]
        %v1597 = vld [vmem:[%s438 + $0x120] sm:$0xff]
        %v1598 = vld [vmem:[%s438 + $0x128] sm:$0xff]
        %v1599 = vld [vmem:[%s438 + $0x130] sm:$0xff]
        %v1600 = vld [vmem:[%s438 + $0x138] sm:$0xff]
        %v1601 = vld [vmem:[%s438 + $0x140] sm:$0xff]
        %v1602 = vld [vmem:[%s438 + $0x148] sm:$0xff]
        %v1603 = vld [vmem:[%s438 + $0x150] sm:$0xff]
        %v1604 = vld [vmem:[%s438 + $0x158] sm:$0xff]
        %v1605 = vld [vmem:[%s438 + $0x160] sm:$0xff]
        %v1606 = vld [vmem:[%s438 + $0x168] sm:$0xff]
        %v1607 = vld [vmem:[%s438 + $0x170] sm:$0xff]
        %v1608 = vld [vmem:[%s438 + $0x178] sm:$0xff]
        %v1609 = vld [vmem:[%s438 + $0x180] sm:$0xff]
        %v1610 = vld [vmem:[%s438 + $0x188] sm:$0xff]
        %v1611 = vld [vmem:[%s438 + $0x190] sm:$0xff]
        %v1612 = vld [vmem:[%s438 + $0x198] sm:$0xff]
        %v1613 = vld [vmem:[%s438 + $0x1a0] sm:$0xff]
        %v1614 = vld [vmem:[%s438 + $0x1a8] sm:$0xff]
        %v1615 = vld [vmem:[%s438 + $0x1b0] sm:$0xff]
        %v1616 = vld [vmem:[%s438 + $0x1b8] sm:$0xff]
        %v1617 = vld [vmem:[%s438 + $0x1c0] sm:$0xff]
        %v1618 = vld [vmem:[%s438 + $0x1c8] sm:$0xff]
        %v1619 = vld [vmem:[%s438 + $0x1d0] sm:$0xff]
        %v1620 = vld [vmem:[%s438 + $0x1d8] sm:$0xff]
        %v1621 = vld [vmem:[%s438 + $0x1e0] sm:$0xff]
        %v1622 = vld [vmem:[%s438 + $0x1e8] sm:$0xff]
        %v1623 = vld [vmem:[%s438 + $0x1f0] sm:$0xff]
        %v1624 = vld [vmem:[%s438 + $0x1f8] sm:$0xff]
        %v1625 = vmul.f32 %v536, %v1561
        %v1626 = vmul.f32 %v537, %v1562
        %v1627 = vmul.f32 %v538, %v1563
        %v1628 = vmul.f32 %v539, %v1564
        %v1629 = vmul.f32 %v540, %v1565
        %v1630 = vmul.f32 %v541, %v1566
        %v1631 = vmul.f32 %v542, %v1567
        %v1632 = vmul.f32 %v543, %v1568
        %v1633 = vmul.f32 %v544, %v1569
        %v1634 = vmul.f32 %v545, %v1570
        %v1635 = vmul.f32 %v546, %v1571
        %v1636 = vmul.f32 %v547, %v1572
        %v1637 = vmul.f32 %v548, %v1573
        %v1638 = vmul.f32 %v549, %v1574
        %v1639 = vmul.f32 %v550, %v1575
        %v1640 = vmul.f32 %v551, %v1576
        %v1641 = vmul.f32 %v552, %v1577
        %v1642 = vmul.f32 %v553, %v1578
        %v1643 = vmul.f32 %v554, %v1579
        %v1644 = vmul.f32 %v555, %v1580
        %v1645 = vmul.f32 %v556, %v1581
        %v1646 = vmul.f32 %v557, %v1582
        %v1647 = vmul.f32 %v558, %v1583
        %v1648 = vmul.f32 %v559, %v1584
        %v1649 = vmul.f32 %v560, %v1585
        %v1650 = vmul.f32 %v561, %v1586
        %v1651 = vmul.f32 %v562, %v1587
        %v1652 = vmul.f32 %v563, %v1588
        %v1653 = vmul.f32 %v564, %v1589
        %v1654 = vmul.f32 %v565, %v1590
        %v1655 = vmul.f32 %v566, %v1591
        %v1656 = vmul.f32 %v567, %v1592
        %v1657 = vmul.f32 %v568, %v1593
        %v1658 = vmul.f32 %v569, %v1594
        %v1659 = vmul.f32 %v570, %v1595
        %v1660 = vmul.f32 %v571, %v1596
        %v1661 = vmul.f32 %v572, %v1597
        %v1662 = vmul.f32 %v573, %v1598
        %v1663 = vmul.f32 %v574, %v1599
        %v1664 = vmul.f32 %v575, %v1600
        %v1665 = vmul.f32 %v576, %v1601
        %v1666 = vmul.f32 %v577, %v1602
        %v1667 = vmul.f32 %v578, %v1603
        %v1668 = vmul.f32 %v579, %v1604
        %v1669 = vmul.f32 %v580, %v1605
        %v1670 = vmul.f32 %v581, %v1606
        %v1671 = vmul.f32 %v582, %v1607
        %v1672 = vmul.f32 %v583, %v1608
        %v1673 = vmul.f32 %v584, %v1609
        %v1674 = vmul.f32 %v585, %v1610
        %v1675 = vmul.f32 %v586, %v1611
        %v1676 = vmul.f32 %v587, %v1612
        %v1677 = vmul.f32 %v588, %v1613
        %v1678 = vmul.f32 %v589, %v1614
        %v1679 = vmul.f32 %v590, %v1615
        %v1680 = vmul.f32 %v591, %v1616
        %v1681 = vmul.f32 %v592, %v1617
        %v1682 = vmul.f32 %v593, %v1618
        %v1683 = vmul.f32 %v594, %v1619
        %v1684 = vmul.f32 %v595, %v1620
        %v1685 = vmul.f32 %v596, %v1621
        %v1686 = vmul.f32 %v597, %v1622
        %v1687 = vmul.f32 %v598, %v1623
        %v1688 = vmul.f32 %v599, %v1624
        %1689 = vadd.xlane.f32.xlu0 %v1625
        %v1690 = vpop.xlane.xlu0 %1689
        %1691 = vadd.xlane.f32.xlu0 %v1626
        %v1692 = vpop.xlane.xlu0 %1691
        %1693 = vadd.xlane.f32.xlu0 %v1627
        %v1694 = vpop.xlane.xlu0 %1693
        %1695 = vadd.xlane.f32.xlu0 %v1628
        %v1696 = vpop.xlane.xlu0 %1695
        %1697 = vadd.xlane.f32.xlu0 %v1629
        %v1698 = vpop.xlane.xlu0 %1697
        %1699 = vadd.xlane.f32.xlu0 %v1630
        %v1700 = vpop.xlane.xlu0 %1699
        %1701 = vadd.xlane.f32.xlu0 %v1631
        %v1702 = vpop.xlane.xlu0 %1701
        %1703 = vadd.xlane.f32.xlu0 %v1632
        %v1704 = vpop.xlane.xlu0 %1703
        %1705 = vadd.xlane.f32.xlu0 %v1633
        %v1706 = vpop.xlane.xlu0 %1705
        %1707 = vadd.xlane.f32.xlu0 %v1634
        %v1708 = vpop.xlane.xlu0 %1707
        %1709 = vadd.xlane.f32.xlu0 %v1635
        %v1710 = vpop.xlane.xlu0 %1709
        %1711 = vadd.xlane.f32.xlu0 %v1636
        %v1712 = vpop.xlane.xlu0 %1711
        %1713 = vadd.xlane.f32.xlu0 %v1637
        %v1714 = vpop.xlane.xlu0 %1713
        %1715 = vadd.xlane.f32.xlu0 %v1638
        %v1716 = vpop.xlane.xlu0 %1715
        %1717 = vadd.xlane.f32.xlu0 %v1639
        %v1718 = vpop.xlane.xlu0 %1717
        %1719 = vadd.xlane.f32.xlu0 %v1640
        %v1720 = vpop.xlane.xlu0 %1719
        %1721 = vadd.xlane.f32.xlu0 %v1641
        %v1722 = vpop.xlane.xlu0 %1721
        %1723 = vadd.xlane.f32.xlu0 %v1642
        %v1724 = vpop.xlane.xlu0 %1723
        %1725 = vadd.xlane.f32.xlu0 %v1643
        %v1726 = vpop.xlane.xlu0 %1725
        %1727 = vadd.xlane.f32.xlu0 %v1644
        %v1728 = vpop.xlane.xlu0 %1727
        %1729 = vadd.xlane.f32.xlu0 %v1645
        %v1730 = vpop.xlane.xlu0 %1729
        %1731 = vadd.xlane.f32.xlu0 %v1646
        %v1732 = vpop.xlane.xlu0 %1731
        %1733 = vadd.xlane.f32.xlu0 %v1647
        %v1734 = vpop.xlane.xlu0 %1733
        %1735 = vadd.xlane.f32.xlu0 %v1648
        %v1736 = vpop.xlane.xlu0 %1735
        %1737 = vadd.xlane.f32.xlu0 %v1649
        %v1738 = vpop.xlane.xlu0 %1737
        %1739 = vadd.xlane.f32.xlu0 %v1650
        %v1740 = vpop.xlane.xlu0 %1739
        %1741 = vadd.xlane.f32.xlu0 %v1651
        %v1742 = vpop.xlane.xlu0 %1741
        %1743 = vadd.xlane.f32.xlu0 %v1652
        %v1744 = vpop.xlane.xlu0 %1743
        %1745 = vadd.xlane.f32.xlu0 %v1653
        %v1746 = vpop.xlane.xlu0 %1745
        %1747 = vadd.xlane.f32.xlu0 %v1654
        %v1748 = vpop.xlane.xlu0 %1747
        %1749 = vadd.xlane.f32.xlu0 %v1655
        %v1750 = vpop.xlane.xlu0 %1749
        %1751 = vadd.xlane.f32.xlu0 %v1656
        %v1752 = vpop.xlane.xlu0 %1751
        %1753 = vadd.xlane.f32.xlu0 %v1657
        %v1754 = vpop.xlane.xlu0 %1753
        %1755 = vadd.xlane.f32.xlu0 %v1658
        %v1756 = vpop.xlane.xlu0 %1755
        %1757 = vadd.xlane.f32.xlu0 %v1659
        %v1758 = vpop.xlane.xlu0 %1757
        %1759 = vadd.xlane.f32.xlu0 %v1660
        %v1760 = vpop.xlane.xlu0 %1759
        %1761 = vadd.xlane.f32.xlu0 %v1661
        %v1762 = vpop.xlane.xlu0 %1761
        %1763 = vadd.xlane.f32.xlu0 %v1662
        %v1764 = vpop.xlane.xlu0 %1763
        %1765 = vadd.xlane.f32.xlu0 %v1663
        %v1766 = vpop.xlane.xlu0 %1765
        %1767 = vadd.xlane.f32.xlu0 %v1664
        %v1768 = vpop.xlane.xlu0 %1767
        %1769 = vadd.xlane.f32.xlu0 %v1665
        %v1770 = vpop.xlane.xlu0 %1769
        %1771 = vadd.xlane.f32.xlu0 %v1666
        %v1772 = vpop.xlane.xlu0 %1771
        %1773 = vadd.xlane.f32.xlu0 %v1667
        %v1774 = vpop.xlane.xlu0 %1773
        %1775 = vadd.xlane.f32.xlu0 %v1668
        %v1776 = vpop.xlane.xlu0 %1775
        %1777 = vadd.xlane.f32.xlu0 %v1669
        %v1778 = vpop.xlane.xlu0 %1777
        %1779 = vadd.xlane.f32.xlu0 %v1670
        %v1780 = vpop.xlane.xlu0 %1779
        %1781 = vadd.xlane.f32.xlu0 %v1671
        %v1782 = vpop.xlane.xlu0 %1781
        %1783 = vadd.xlane.f32.xlu0 %v1672
        %v1784 = vpop.xlane.xlu0 %1783
        %1785 = vadd.xlane.f32.xlu0 %v1673
        %v1786 = vpop.xlane.xlu0 %1785
        %1787 = vadd.xlane.f32.xlu0 %v1674
        %v1788 = vpop.xlane.xlu0 %1787
        %1789 = vadd.xlane.f32.xlu0 %v1675
        %v1790 = vpop.xlane.xlu0 %1789
        %1791 = vadd.xlane.f32.xlu0 %v1676
        %v1792 = vpop.xlane.xlu0 %1791
        %1793 = vadd.xlane.f32.xlu0 %v1677
        %v1794 = vpop.xlane.xlu0 %1793
        %1795 = vadd.xlane.f32.xlu0 %v1678
        %v1796 = vpop.xlane.xlu0 %1795
        %1797 = vadd.xlane.f32.xlu0 %v1679
        %v1798 = vpop.xlane.xlu0 %1797
        %1799 = vadd.xlane.f32.xlu0 %v1680
        %v1800 = vpop.xlane.xlu0 %1799
        %1801 = vadd.xlane.f32.xlu0 %v1681
        %v1802 = vpop.xlane.xlu0 %1801
        %1803 = vadd.xlane.f32.xlu0 %v1682
        %v1804 = vpop.xlane.xlu0 %1803
        %1805 = vadd.xlane.f32.xlu0 %v1683
        %v1806 = vpop.xlane.xlu0 %1805
        %1807 = vadd.xlane.f32.xlu0 %v1684
        %v1808 = vpop.xlane.xlu0 %1807
        %1809 = vadd.xlane.f32.xlu0 %v1685
        %v1810 = vpop.xlane.xlu0 %1809
        %1811 = vadd.xlane.f32.xlu0 %v1686
        %v1812 = vpop.xlane.xlu0 %1811
        %1813 = vadd.xlane.f32.xlu0 %v1687
        %v1814 = vpop.xlane.xlu0 %1813
        %1815 = vadd.xlane.f32.xlu0 %v1688
        %v1816 = vpop.xlane.xlu0 %1815
        %1817 = vst.msk [vmem:[%s534] sm:$0xff] %vm856, %v1690
        %1818 = vst.msk [vmem:[%s534 + $0x8] sm:$0xff] %vm856, %v1692
        %1819 = vst.msk [vmem:[%s534 + $0x10] sm:$0xff] %vm856, %v1694
        %1820 = vst.msk [vmem:[%s534 + $0x18] sm:$0xff] %vm856, %v1696
        %1821 = vst.msk [vmem:[%s534 + $0x20] sm:$0xff] %vm856, %v1698
        %1822 = vst.msk [vmem:[%s534 + $0x28] sm:$0xff] %vm856, %v1700
        %1823 = vst.msk [vmem:[%s534 + $0x30] sm:$0xff] %vm856, %v1702
        %1824 = vst.msk [vmem:[%s534 + $0x38] sm:$0xff] %vm856, %v1704
        %1825 = vst.msk [vmem:[%s534 + $0x40] sm:$0xff] %vm856, %v1706
        %1826 = vst.msk [vmem:[%s534 + $0x48] sm:$0xff] %vm856, %v1708
        %1827 = vst.msk [vmem:[%s534 + $0x50] sm:$0xff] %vm856, %v1710
        %1828 = vst.msk [vmem:[%s534 + $0x58] sm:$0xff] %vm856, %v1712
        %1829 = vst.msk [vmem:[%s534 + $0x60] sm:$0xff] %vm856, %v1714
        %1830 = vst.msk [vmem:[%s534 + $0x68] sm:$0xff] %vm856, %v1716
        %1831 = vst.msk [vmem:[%s534 + $0x70] sm:$0xff] %vm856, %v1718
        %1832 = vst.msk [vmem:[%s534 + $0x78] sm:$0xff] %vm856, %v1720
        %1833 = vst.msk [vmem:[%s534 + $0x80] sm:$0xff] %vm856, %v1722
        %1834 = vst.msk [vmem:[%s534 + $0x88] sm:$0xff] %vm856, %v1724
        %1835 = vst.msk [vmem:[%s534 + $0x90] sm:$0xff] %vm856, %v1726
        %1836 = vst.msk [vmem:[%s534 + $0x98] sm:$0xff] %vm856, %v1728
        %1837 = vst.msk [vmem:[%s534 + $0xa0] sm:$0xff] %vm856, %v1730
        %1838 = vst.msk [vmem:[%s534 + $0xa8] sm:$0xff] %vm856, %v1732
        %1839 = vst.msk [vmem:[%s534 + $0xb0] sm:$0xff] %vm856, %v1734
        %1840 = vst.msk [vmem:[%s534 + $0xb8] sm:$0xff] %vm856, %v1736
        %1841 = vst.msk [vmem:[%s534 + $0xc0] sm:$0xff] %vm856, %v1738
        %1842 = vst.msk [vmem:[%s534 + $0xc8] sm:$0xff] %vm856, %v1740
        %1843 = vst.msk [vmem:[%s534 + $0xd0] sm:$0xff] %vm856, %v1742
        %1844 = vst.msk [vmem:[%s534 + $0xd8] sm:$0xff] %vm856, %v1744
        %1845 = vst.msk [vmem:[%s534 + $0xe0] sm:$0xff] %vm856, %v1746
        %1846 = vst.msk [vmem:[%s534 + $0xe8] sm:$0xff] %vm856, %v1748
        %1847 = vst.msk [vmem:[%s534 + $0xf0] sm:$0xff] %vm856, %v1750
        %1848 = vst.msk [vmem:[%s534 + $0xf8] sm:$0xff] %vm856, %v1752
        %1849 = vst.msk [vmem:[%s534 + $0x100] sm:$0xff] %vm856, %v1754
        %1850 = vst.msk [vmem:[%s534 + $0x108] sm:$0xff] %vm856, %v1756
        %1851 = vst.msk [vmem:[%s534 + $0x110] sm:$0xff] %vm856, %v1758
        %1852 = vst.msk [vmem:[%s534 + $0x118] sm:$0xff] %vm856, %v1760
        %1853 = vst.msk [vmem:[%s534 + $0x120] sm:$0xff] %vm856, %v1762
        %1854 = vst.msk [vmem:[%s534 + $0x128] sm:$0xff] %vm856, %v1764
        %1855 = vst.msk [vmem:[%s534 + $0x130] sm:$0xff] %vm856, %v1766
        %1856 = vst.msk [vmem:[%s534 + $0x138] sm:$0xff] %vm856, %v1768
        %1857 = vst.msk [vmem:[%s534 + $0x140] sm:$0xff] %vm856, %v1770
        %1858 = vst.msk [vmem:[%s534 + $0x148] sm:$0xff] %vm856, %v1772
        %1859 = vst.msk [vmem:[%s534 + $0x150] sm:$0xff] %vm856, %v1774
        %1860 = vst.msk [vmem:[%s534 + $0x158] sm:$0xff] %vm856, %v1776
        %1861 = vst.msk [vmem:[%s534 + $0x160] sm:$0xff] %vm856, %v1778
        %1862 = vst.msk [vmem:[%s534 + $0x168] sm:$0xff] %vm856, %v1780
        %1863 = vst.msk [vmem:[%s534 + $0x170] sm:$0xff] %vm856, %v1782
        %1864 = vst.msk [vmem:[%s534 + $0x178] sm:$0xff] %vm856, %v1784
        %1865 = vst.msk [vmem:[%s534 + $0x180] sm:$0xff] %vm856, %v1786
        %1866 = vst.msk [vmem:[%s534 + $0x188] sm:$0xff] %vm856, %v1788
        %1867 = vst.msk [vmem:[%s534 + $0x190] sm:$0xff] %vm856, %v1790
        %1868 = vst.msk [vmem:[%s534 + $0x198] sm:$0xff] %vm856, %v1792
        %1869 = vst.msk [vmem:[%s534 + $0x1a0] sm:$0xff] %vm856, %v1794
        %1870 = vst.msk [vmem:[%s534 + $0x1a8] sm:$0xff] %vm856, %v1796
        %1871 = vst.msk [vmem:[%s534 + $0x1b0] sm:$0xff] %vm856, %v1798
        %1872 = vst.msk [vmem:[%s534 + $0x1b8] sm:$0xff] %vm856, %v1800
        %1873 = vst.msk [vmem:[%s534 + $0x1c0] sm:$0xff] %vm856, %v1802
        %1874 = vst.msk [vmem:[%s534 + $0x1c8] sm:$0xff] %vm856, %v1804
        %1875 = vst.msk [vmem:[%s534 + $0x1d0] sm:$0xff] %vm856, %v1806
        %1876 = vst.msk [vmem:[%s534 + $0x1d8] sm:$0xff] %vm856, %v1808
        %1877 = vst.msk [vmem:[%s534 + $0x1e0] sm:$0xff] %vm856, %v1810
        %1878 = vst.msk [vmem:[%s534 + $0x1e8] sm:$0xff] %vm856, %v1812
        %1879 = vst.msk [vmem:[%s534 + $0x1f0] sm:$0xff] %vm856, %v1814
        %1880 = vst.msk [vmem:[%s534 + $0x1f8] sm:$0xff] %vm856, %v1816
        %s1881 = smul.u32 64, %s29
        %p1882 = scmp.lt.s32.totalorder %s1881, 127
        %s1883 = scalar_select %p1882, %s1881, 127
        %s1884 = smul.addr %s1883, 8
        %s1885 = scalar_lea.vmem %s5, %s1884
        %s1886 = smul.u32 64, %s29
        %p1887 = scmp.lt.s32.totalorder %s1886, 127
        %s1888 = scalar_select %p1887, %s1886, 127
        %s1889 = smul.addr %s1888, 8
        %s1890 = scalar_lea.vmem %s6, %s1889
        %s1891 = smul.u32 64, %s29
        %p1892 = scmp.lt.s32.totalorder %s1891, 127
        %s1893 = scalar_select %p1892, %s1891, 127
        %s1894 = smul.addr %s1893, 8
        %s1895 = scalar_lea.vmem %s7, %s1894
        %s1896 = smul.u32 64, %s29
        %p1897 = scmp.lt.s32.totalorder %s1896, 127
        %s1898 = scalar_select %p1897, %s1896, 127
        %s1899 = smul.addr %s1898, 8
        %s1900 = scalar_lea.vmem %s8, %s1899
        // Predicated region
        $region61: #{tpu_custom_call.1} parent=39 // pred_check
          %p1901 = pneg %p177
        $region62: #{tpu_custom_call.1} parent=39 // pred_check_branch
          %1903 = sbr.rel (%p1901) target = $region64
        $region63: #{tpu_custom_call.1} parent=39 // pred_region
          %s1904 = smul.u32 64, %s29
        $region64: #{tpu_custom_call.1} parent=39 // pred_fallthru
          _
        // Predicated region
        $region65: #{tpu_custom_call.1} parent=39 // pred_check
          %p1905 = pneg %p203
        $region66: #{tpu_custom_call.1} parent=39 // pred_check_branch
          %1907 = sbr.rel (%p1905) target = $region68
        $region67: #{tpu_custom_call.1} parent=39 // pred_region
          %s1908 = smul.u32 64, %s29
        $region68: #{tpu_custom_call.1} parent=39 // pred_fallthru
          _
        // Predicated region
        $region69: #{tpu_custom_call.1} parent=39 // pred_check
          %p1909 = pneg %p229
        $region70: #{tpu_custom_call.1} parent=39 // pred_check_branch
          %1911 = sbr.rel (%p1909) target = $region72
        $region71: #{tpu_custom_call.1} parent=39 // pred_region
          %s1912 = smul.u32 64, %s29
        $region72: #{tpu_custom_call.1} parent=39 // pred_fallthru
          _
        // Predicated region
        $region73: #{tpu_custom_call.1} parent=39 // pred_check
          %p1913 = pneg %p255
        $region74: #{tpu_custom_call.1} parent=39 // pred_check_branch
          %1915 = sbr.rel (%p1913) target = $region76
        $region75: #{tpu_custom_call.1} parent=39 // pred_region
          %s1916 = smul.u32 64, %s29
        $region76: #{tpu_custom_call.1} parent=39 // pred_fallthru
          _
      $region40: #{tpu_custom_call.1} parent=5 // pred_fallthru
        _
      %p1917 = scmp.le.s32.totalorder 2, %s24
      // Predicated region
      $region77: #{tpu_custom_call.1} parent=5 // pred_check
        %p1918 = pneg %p1917
      $region78: #{tpu_custom_call.1} parent=5 // pred_check_branch
        %1920 = sbr.rel (%p1918) target = $region80
      $region79: #{tpu_custom_call.1} parent=5 // pred_region
        %s1921 = ssub.s32 %s24, 2
        // Predicated region
        $region81: #{tpu_custom_call.1} parent=79 // pred_check
          %p1922 = pneg %p183
        $region82: #{tpu_custom_call.1} parent=79 // pred_check_branch
          %1924 = sbr.rel (%p1922) target = $region84
        $region83: #{tpu_custom_call.1} parent=79 // pred_region
          %s1925 = smul.u32 64, %s30
          %p1926 = scmp.lt.s32.totalorder %s1925, 127
          %s1927 = scalar_select %p1926, %s1925, 127
          %s1928 = smul.addr %s1927, 8
          %s1929 = scalar_lea.vmem %s5, %s1928
        $region84: #{tpu_custom_call.1} parent=79 // pred_fallthru
          _
        // Predicated region
        $region85: #{tpu_custom_call.1} parent=79 // pred_check
          %p1930 = pneg %p209
        $region86: #{tpu_custom_call.1} parent=79 // pred_check_branch
          %1932 = sbr.rel (%p1930) target = $region88
        $region87: #{tpu_custom_call.1} parent=79 // pred_region
          %s1933 = smul.u32 64, %s30
          %p1934 = scmp.lt.s32.totalorder %s1933, 127
          %s1935 = scalar_select %p1934, %s1933, 127
          %s1936 = smul.addr %s1935, 8
          %s1937 = scalar_lea.vmem %s6, %s1936
        $region88: #{tpu_custom_call.1} parent=79 // pred_fallthru
          _
        // Predicated region
        $region89: #{tpu_custom_call.1} parent=79 // pred_check
          %p1938 = pneg %p235
        $region90: #{tpu_custom_call.1} parent=79 // pred_check_branch
          %1940 = sbr.rel (%p1938) target = $region92
        $region91: #{tpu_custom_call.1} parent=79 // pred_region
          %s1941 = smul.u32 64, %s30
          %p1942 = scmp.lt.s32.totalorder %s1941, 127
          %s1943 = scalar_select %p1942, %s1941, 127
          %s1944 = smul.addr %s1943, 8
          %s1945 = scalar_lea.vmem %s7, %s1944
        $region92: #{tpu_custom_call.1} parent=79 // pred_fallthru
          _
        // Predicated region
        $region93: #{tpu_custom_call.1} parent=79 // pred_check
          %p1946 = pneg %p261
        $region94: #{tpu_custom_call.1} parent=79 // pred_check_branch
          %1948 = sbr.rel (%p1946) target = $region96
        $region95: #{tpu_custom_call.1} parent=79 // pred_region
          %s1949 = smul.u32 64, %s30
          %p1950 = scmp.lt.s32.totalorder %s1949, 127
          %s1951 = scalar_select %p1950, %s1949, 127
          %s1952 = smul.addr %s1951, 8
          %s1953 = scalar_lea.vmem %s8, %s1952
        $region96: #{tpu_custom_call.1} parent=79 // pred_fallthru
          _
      $region80: #{tpu_custom_call.1} parent=5 // pred_fallthru
        _
    $region6: #{tpu_custom_call.1} parent=1 // loop_footer
      %s28 = sadd.s32 1, %s24
    $region7: #{tpu_custom_call.1} parent=1 // loop_footer_branch
      %23 = sbr.rel target = $region3
    $region8: #{tpu_custom_call.1} parent=1 // loop_exit
      _
    %1954 = vsyncpa [#allocation3], 1
    %s1955 = scalar_lea.sflag [#allocation3], 1
    %1956 = vsyncpa %s1955, 1
    %1957 = vsyncpa [#allocation5], 1
    %s1958 = scalar_lea.sflag [#allocation5], 1
    %1959 = vsyncpa %s1958, 1
    %1960 = vsyncpa [#allocation8], 1
    %s1961 = scalar_lea.sflag [#allocation8], 1
    %1962 = vsyncpa %s1961, 1

</llo_original>
